<compile_context>
chip_gen: v6e
topology: v6e:2x2x1
jax: 0.10.0
libtpu: 0.0.40
codegen_flags: <defaults>
</compile_context>

<pallas_src>
import functools

import jax
import jax.numpy as jnp
from jax.experimental import pallas as pl
from jax.experimental.pallas import tpu as pltpu


def _round_up(x, m):
    return (x + m - 1) // m * m


def _cdiv(a, b):
    return (a + b - 1) // b


def _detect_vmem_limit():
    # v5e/v6e: 128 MiB physical VMEM -> allow big blocks / deep pipelining.
    # v7x: only 64 MiB physical -> stay conservative (also the safe default).
    try:
        kind = jax.devices()[0].device_kind.lower()
    except Exception:
        kind = ''
    if 'v5' in kind or 'v6' in kind:
        return 100 * 1024 * 1024
    return 48 * 1024 * 1024


_VMEM_LIMIT = _detect_vmem_limit()


# --------------------------------------------------------------------------
# Pallas kernels
# --------------------------------------------------------------------------

def _epilogue(acc, bias, res, apply_relu, out_dtype):
    acc = acc + bias
    if res is not None:
        acc = acc + res.astype(jnp.float32)
    if apply_relu:
        acc = jnp.maximum(acc, 0.0)
    return acc.astype(out_dtype)


def _matmul_kernel(a_ref, b_ref, bias_ref, o_ref, *, apply_relu):
    acc = jnp.dot(a_ref[...], b_ref[...], preferred_element_type=jnp.float32)
    o_ref[...] = _epilogue(acc, bias_ref[...], None, apply_relu, o_ref.dtype)


def _matmul_res_kernel(a_ref, b_ref, bias_ref, res_ref, o_ref, *, apply_relu):
    acc = jnp.dot(a_ref[...], b_ref[...], preferred_element_type=jnp.float32)
    o_ref[...] = _epilogue(acc, bias_ref[...], res_ref[...], apply_relu, o_ref.dtype)


def matmul_bias_act(a, wm, bias, *, relu, residual=None, out_dtype=jnp.bfloat16):
    """out = act(a @ wm + bias [+ residual]).  a:(M,K) bf16, wm:(K,Co) bf16 (BN scale
    pre-folded), bias:(Co,) f32.  Full-K blocks; M/N tiled; tm=256 for very deep K."""
    M, K = a.shape
    Co = wm.shape[1]
    tm = min(M, 256 if K >= 2048 else 512)
    tn = min(Co, 512)
    assert Co % tn == 0, (Co, tn)
    grid = (pl.cdiv(M, tm), pl.cdiv(Co, tn))
    bias2 = bias.reshape(1, Co).astype(jnp.float32)

    in_specs = [
        pl.BlockSpec((tm, K), lambda i, j: (i, 0)),
        pl.BlockSpec((K, tn), lambda i, j: (0, j)),
        pl.BlockSpec((1, tn), lambda i, j: (0, j)),
    ]
    operands = [a, wm, bias2]
    if residual is not None:
        in_specs.append(pl.BlockSpec((tm, tn), lambda i, j: (i, j)))
        operands.append(residual)
        kernel = functools.partial(_matmul_res_kernel, apply_relu=relu)
    else:
        kernel = functools.partial(_matmul_kernel, apply_relu=relu)

    return pl.pallas_call(
        kernel,
        out_shape=jax.ShapeDtypeStruct((M, Co), out_dtype),
        grid=grid,
        in_specs=in_specs,
        out_specs=pl.BlockSpec((tm, tn), lambda i, j: (i, j)),
        compiler_params=pltpu.CompilerParams(
            dimension_semantics=("parallel", "parallel"),
            vmem_limit_bytes=_VMEM_LIMIT),
    )(*operands)


def _tap_conv_kernel(a_ref, w_ref, bias_ref, o_ref, *, tap_offsets, apply_relu):
    """Direct stride-1 conv on a halo row tile: accumulate the taps of the
    (row-flattened) activation block at static row offsets.  a_ref: (R_blk, Kc) bf16,
    w_ref: (ntaps*Kc, tco) bf16 (tap t uses rows [t*Kc, (t+1)*Kc))."""
    m = o_ref.shape[0]
    kc = a_ref.shape[1]
    acc = jnp.zeros((m, o_ref.shape[1]), jnp.float32)
    for t, off in enumerate(tap_offsets):
        acc = acc + jnp.dot(a_ref[off:off + m, :], w_ref[t * kc:(t + 1) * kc, :],
                            preferred_element_type=jnp.float32)
    o_ref[...] = _epilogue(acc, bias_ref[...], None, apply_relu, o_ref.dtype)


def tap_conv(a, wm, bias, *, tap_offsets, m_out, relu):
    """a: (N, T, R_blk, Kc) bf16 halo row tiles; wm: (ntaps*Kc, Co) bf16;
    bias: (Co,) f32 -> (N, T, m_out, Co) bf16."""
    N, T, Rb, Kc = a.shape
    Co = wm.shape[1]
    ntaps = len(tap_offsets)
    assert wm.shape[0] == ntaps * Kc, (wm.shape, ntaps, Kc)
    tco = min(Co, 256)
    assert Co % tco == 0, (Co, tco)
    bias2 = bias.reshape(1, Co).astype(jnp.float32)
    kernel = functools.partial(_tap_conv_kernel, tap_offsets=tuple(tap_offsets),
                               apply_relu=relu)
    return pl.pallas_call(
        kernel,
        out_shape=jax.ShapeDtypeStruct((N, T, m_out, Co), jnp.bfloat16),
        grid=(N, pl.cdiv(Co, tco), T),   # row tiles fastest: weights stay resident
        in_specs=[
            pl.BlockSpec((None, None, Rb, Kc), lambda n, c, t: (n, t, 0, 0)),
            pl.BlockSpec((ntaps * Kc, tco), lambda n, c, t: (0, c)),
            pl.BlockSpec((1, tco), lambda n, c, t: (0, c)),
        ],
        out_specs=pl.BlockSpec((None, None, m_out, tco), lambda n, c, t: (n, t, 0, c)),
        compiler_params=pltpu.CompilerParams(
            dimension_semantics=("parallel", "parallel", "parallel"),
            vmem_limit_bytes=_VMEM_LIMIT),
    )(a, wm, bias2)


def _deconv_fused_kernel(a_ref, w_ref, bias_ref, o_ref, acc_ref, *, wp_a):
    """All four ConvTranspose(4,4,s=2,p=1) sub-pixel phases fused: each phase is a
    2x2 stride-1 tap conv on the (pad=1) input; output columns [ph*Co,(ph+1)*Co)
    hold phase ph = 2*r + c.  K (input channels) is tiled along grid axis 2 and
    accumulated into a f32 scratch."""
    k = pl.program_id(2)

    @pl.when(k == 0)
    def _init():
        acc_ref[...] = jnp.zeros_like(acc_ref)

    m = o_ref.shape[0]
    co = bias_ref.shape[1]
    for ph in range(4):
        r, c = divmod(ph, 2)
        acc = acc_ref[ph]
        for dy in range(2):
            for dx in range(2):
                off = (r + dy) * wp_a + (c + dx)
                acc = acc + jnp.dot(a_ref[off:off + m, :], w_ref[ph, 2 * dy + dx],
                                    preferred_element_type=jnp.float32)
        acc_ref[ph] = acc

    @pl.when(k == pl.num_programs(2) - 1)
    def _finish():
        for ph in range(4):
            o_ref[:, ph * co:(ph + 1) * co] = jnp.maximum(
                acc_ref[ph] + bias_ref[...], 0.0).astype(o_ref.dtype)


# --------------------------------------------------------------------------
# Conv / deconv / pool glue (slicing only; all matmul work is in Pallas kernels)
# --------------------------------------------------------------------------

def _pick_tr(h):
    """Output rows per tile: whole image if small, else ~half capped at 16 so the
    row-tile axis has >= 2 parallel steps (v7x dual TC) and per-step VMEM is small."""
    return h if h <= 8 else min(16, (h + 1) // 2)


def _halo_tiles(xp, tr, n_tiles, rows_per_tile):
    """(N, Hp, Wp, C) -> (N, T, rows_per_tile, Wp, C) overlapping row tiles."""
    tiles = [xp[:, t * tr:t * tr + rows_per_tile] for t in range(n_tiles)]
    return jnp.stack(tiles, axis=1)


def conv_bn(x, p, *, relu, residual=None, out_dtype=jnp.bfloat16):
    """x: NHWC bf16.  p: prepared conv dict (BN scale folded into 'wm', bias in 'bias')."""
    N, H, W, Ci = x.shape
    kh, kw, s = p['kh'], p['kw'], p['stride']
    pt, pb, pw_l, pw_r = p['pad']
    Ho = (H + pt + pb - kh) // s + 1
    Wo = (W + pw_l + pw_r - kw) // s + 1
    Co = p['wm'].shape[1]
    res2 = None if residual is None else residual.reshape(N * Ho * Wo, Co)

    if kh == 1 and kw == 1:
        xs = x if s == 1 else x[:, ::s, ::s, :]
        a = xs.reshape(N * Ho * Wo, Ci)
        out = matmul_bias_act(a, p['wm'], p['bias'], relu=relu,
                              residual=res2, out_dtype=out_dtype)
        return out.reshape(N, Ho, Wo, Co)

    if s == 1:
        # Direct stride-1 conv: taps accumulated inside the kernel on halo row tiles
        # (all in-kernel slices have static offsets; row stride 16-aligned for bf16).
        tr = _pick_tr(Ho)
        T = _cdiv(Ho, tr)
        rows = tr + kh                              # +1 margin row for flat-index overrun
        hp_need = T * tr + kh
        if Ci >= 128:
            # No kw-fold: activation staged once at Ci lane width; all kh*kw taps are
            # static row offsets dy*wp_a + dx inside the kernel (no HBM im2col/fold).
            wp_a = _round_up(W + pw_l + pw_r, 16)
            xp = jnp.pad(x, ((0, 0), (pt, hp_need - H - pt),
                             (pw_l, wp_a - W - pw_l), (0, 0)))
            a = _halo_tiles(xp, tr, T, rows).reshape(N, T, rows * wp_a, Ci)
            taps = tuple(dy * wp_a + dx for dy in range(kh) for dx in range(kw))
        else:
            # Small-Ci (layer1, Ci=64): fold the kw taps along channels so per-tap K
            # stays MXU-deep; kh taps accumulated in-kernel at 16-aligned offsets.
            wp_a = _round_up(Wo, 16)
            xp = jnp.pad(x, ((0, 0), (pt, hp_need - H - pt),
                             (pw_l, (wp_a + kw - 1) - W - pw_l), (0, 0)))
            xw = jnp.concatenate([xp[:, :, dx:dx + wp_a, :] for dx in range(kw)],
                                 axis=-1)
            a = _halo_tiles(xw, tr, T, rows).reshape(N, T, rows * wp_a, kw * Ci)
            taps = tuple(dy * wp_a for dy in range(kh))
        out = tap_conv(a, p['wm'], p['bias'], tap_offsets=taps,
                       m_out=tr * wp_a, relu=relu)
        return out.reshape(N, T * tr, wp_a, Co)[:, :Ho, :Wo, :]

    # Strided kh>1 conv (7x7/s2 stem + the three 3x3/s2 downsampling convs, all at the
    # coarsest resolution of their stage): im2col -> full-K matmul.
    xp = jnp.pad(x, ((0, 0), (pt, pb), (pw_l, pw_r), (0, 0)))
    cols = []
    for dy in range(kh):
        for dx in range(kw):
            cols.append(xp[:, dy:dy + (Ho - 1) * s + 1:s,
                           dx:dx + (Wo - 1) * s + 1:s, :])
    a = jnp.concatenate(cols, axis=-1).reshape(N * Ho * Wo, kh * kw * Ci)
    out = matmul_bias_act(a, p['wm'], p['bias'], relu=relu,
                          residual=res2, out_dtype=out_dtype)
    return out.reshape(N, Ho, Wo, Co)


def deconv_bn(x, p):
    """ConvTranspose2d(4,4,s=2,p=1) + BN + ReLU: four sub-pixel phase 2x2 convs fused
    into one pallas_call (input staged/read once); 2x2 pixel interleave done in glue."""
    N, H, W, Ci = x.shape
    Co = p['co']
    tr = _pick_tr(H)
    T = _cdiv(H, tr)
    rows = tr + 3                                   # taps span 3 input rows (+margin)
    hp_need = T * tr + 3
    wp_a = _round_up(W + 2, 16)
    xp = jnp.pad(x, ((0, 0), (1, hp_need - H - 1), (1, wp_a - W - 1), (0, 0)))
    a = _halo_tiles(xp, tr, T, rows).reshape(N, T, rows * wp_a, Ci)

    tk = min(Ci, 512)
    assert Ci % tk == 0
    n_k = Ci // tk
    m_out = tr * wp_a
    bias2 = p['bias'].reshape(1, Co).astype(jnp.float32)
    kernel = functools.partial(_deconv_fused_kernel, wp_a=wp_a)
    fused = pl.pallas_call(
        kernel,
        out_shape=jax.ShapeDtypeStruct((N, T, m_out, 4 * Co), jnp.bfloat16),
        grid=(N, T, n_k),
        in_specs=[
            pl.BlockSpec((None, None, rows * wp_a, tk), lambda n, t, k: (n, t, 0, k)),
            pl.BlockSpec((4, 4, tk, Co), lambda n, t, k: (0, 0, k, 0)),
            pl.BlockSpec((1, Co), lambda n, t, k: (0, 0)),
        ],
        out_specs=pl.BlockSpec((None, None, m_out, 4 * Co), lambda n, t, k: (n, t, 0, 0)),
        scratch_shapes=[pltpu.VMEM((4, m_out, Co), jnp.float32)],
        compiler_params=pltpu.CompilerParams(
            dimension_semantics=("parallel", "parallel", "arbitrary"),
            vmem_limit_bytes=_VMEM_LIMIT),
    )(a, p['wm'], bias2)

    fused = fused.reshape(N, T * tr, wp_a, 2, 2, Co)[:, :H, :W]         # (N,H,W,r,c,Co)
    return jnp.transpose(fused, (0, 1, 3, 2, 4, 5)).reshape(N, 2 * H, 2 * W, Co)


def maxpool_3x3_s2(x):
    """MaxPool2d(3, stride=2, padding=1) as a fused pairwise-max tree."""
    N, H, W, C = x.shape
    Ho = (H + 2 - 3) // 2 + 1
    Wo = (W + 2 - 3) // 2 + 1
    xp = jnp.pad(x, ((0, 0), (1, 1), (1, 1), (0, 0)), constant_values=-jnp.inf)
    out = None
    for i in range(3):
        for j in range(3):
            sl = xp[:, i:i + 2 * Ho - 1:2, j:j + 2 * Wo - 1:2, :]
            out = sl if out is None else jnp.maximum(out, sl)
    return out


# --------------------------------------------------------------------------
# Deterministic parameter construction (ResNet-50 backbone + deconv head)
# --------------------------------------------------------------------------

_KEY = jax.random.PRNGKey(0)
_CTR = [0]


def _next_key():
    _CTR[0] += 1
    return jax.random.fold_in(_KEY, _CTR[0])


def conv_w(co, ci, kh, kw):
    fan_in = ci * kh * kw
    return jax.random.normal(_next_key(), (co, ci, kh, kw), jnp.float32) * jnp.sqrt(2.0 / fan_in)


def bn_scale_bias(c, eps=1e-5):
    gamma = 1.0 + 0.1 * jax.random.normal(_next_key(), (c,), jnp.float32)
    beta = 0.1 * jax.random.normal(_next_key(), (c,), jnp.float32)
    running_mean = jnp.zeros((c,), jnp.float32)
    running_var = jnp.ones((c,), jnp.float32)
    scale = gamma / jnp.sqrt(running_var + eps)
    bias = beta - running_mean * scale
    return scale, bias


def prep_conv(w, scale, bias, *, stride=1, pad=(0, 0, 0, 0)):
    """PyTorch Conv2d weight (Co,Ci,kh,kw) -> (kh*kw*Ci, Co) matrix with BN scale folded."""
    co, ci, kh, kw = w.shape
    wm = jnp.transpose(w, (2, 3, 1, 0)).reshape(kh * kw * ci, co) * scale[None, :]
    return {'wm': wm.astype(jnp.bfloat16), 'bias': bias.astype(jnp.float32),
            'kh': kh, 'kw': kw, 'stride': stride, 'pad': pad}


def prep_deconv_fused(w_t, scale, bias):
    """PyTorch ConvTranspose2d(4,4,s=2,p=1) weight (Ci,Co,4,4) -> fused sub-pixel phase
    weights (4 phases, 4 taps, Ci, Co).  Phase (r,c), tap (dy,dx) uses kernel element
    (3-2*dy-r, 3-2*dx-c) applied to the pad=1 zero-padded input."""
    ci, co = w_t.shape[0], w_t.shape[1]
    taps = []
    for r in range(2):
        for c in range(2):
            for dy in range(2):
                for dx in range(2):
                    taps.append(w_t[:, :, 3 - 2 * dy - r, 3 - 2 * dx - c] * scale[None, :])
    wm = jnp.stack(taps, axis=0).reshape(4, 4, ci, co).astype(jnp.bfloat16)
    return {'wm': wm, 'bias': bias.astype(jnp.float32), 'ci': ci, 'co': co}


def make_bottleneck(cin, width, stride, downsample):
    p = {
        'conv1': prep_conv(conv_w(width, cin, 1, 1), *bn_scale_bias(width)),
        'conv2': prep_conv(conv_w(width, width, 3, 3), *bn_scale_bias(width),
                           stride=stride, pad=(1, 1, 1, 1)),
        'conv3': prep_conv(conv_w(width * 4, width, 1, 1), *bn_scale_bias(width * 4)),
    }
    if downsample:
        p['down'] = prep_conv(conv_w(width * 4, cin, 1, 1), *bn_scale_bias(width * 4),
                              stride=stride)
    return p


def make_resnet50(num_joints):
    # Stem: pad Ci 3 -> 8 (zero rows) so every contraction dim is sublane-aligned.
    w_stem = jnp.pad(conv_w(64, 3, 7, 7), ((0, 0), (0, 5), (0, 0), (0, 0)))
    params = {'stem': prep_conv(w_stem, *bn_scale_bias(64), stride=2, pad=(3, 3, 3, 3))}

    cin = 64
    layers = []
    for width, blocks, stride in [(64, 3, 1), (128, 4, 2), (256, 6, 2), (512, 3, 2)]:
        blist = []
        for b in range(blocks):
            s = stride if b == 0 else 1
            blist.append(make_bottleneck(cin, width, s, downsample=(b == 0)))
            cin = width * 4
        layers.append(blist)
    params['layers'] = layers

    deconvs = []
    cin = 2048
    for _ in range(3):
        w = jax.random.normal(_next_key(), (cin, 256, 4, 4), jnp.float32) * jnp.sqrt(2.0 / (cin * 16))
        deconvs.append(prep_deconv_fused(w, *bn_scale_bias(256)))
        cin = 256
    params['deconvs'] = deconvs

    # Final 1x1 conv (real bias, no BN).  Pad Co to a lane-aligned width; extra
    # channels are zero and sliced off in the forward pass.
    co_pad = _round_up(num_joints, 128)
    w_final = jnp.pad(conv_w(num_joints, 256, 1, 1),
                      ((0, co_pad - num_joints), (0, 0), (0, 0), (0, 0)))
    b_final = jnp.pad(0.01 * jax.random.normal(_next_key(), (num_joints,), jnp.float32),
                      (0, co_pad - num_joints))
    params['final'] = prep_conv(w_final, jnp.ones((co_pad,), jnp.float32), b_final)
    params['num_joints'] = num_joints
    return params


# --------------------------------------------------------------------------
# Forward pass (matches ResNet.forward with fliptest == False)
# --------------------------------------------------------------------------

def bottleneck_forward(x, p):
    identity = conv_bn(x, p['down'], relu=False) if 'down' in p else x
    out = conv_bn(x, p['conv1'], relu=True)
    out = conv_bn(out, p['conv2'], relu=True)
    # Residual add + final ReLU fused into conv3's matmul epilogue.
    out = conv_bn(out, p['conv3'], relu=True, residual=identity)
    return out


def resnet_forward(params, img_nchw):
    x = jnp.transpose(img_nchw, (0, 2, 3, 1)).astype(jnp.bfloat16)     # NCHW -> NHWC
    x = jnp.pad(x, ((0, 0), (0, 0), (0, 0), (0, 8 - x.shape[-1])))     # 3 -> 8 channels
    # stem: conv1 7x7/2 + bn + relu + maxpool 3x3/2   (modules [0..3])
    x = conv_bn(x, params['stem'], relu=True)
    x = maxpool_3x3_s2(x)
    # layer1..layer4 (modules [4..7] -> C2, C3, C4, C5)
    for blist in params['layers']:
        for p in blist:
            x = bottleneck_forward(x, p)
    # deconv head (modules [8..10])
    for dp in params['deconvs']:
        x = deconv_bn(x, dp)
    # final 1x1 conv with bias (module [11])
    x = conv_bn(x, params['final'], relu=False, out_dtype=jnp.float32)
    x = x[..., :params['num_joints']]
    return [jnp.transpose(x, (0, 3, 1, 2))]                            # NHWC -> NCHW


# --------------------------------------------------------------------------
# Pure-JAX f32 references for kernel self-checks
# --------------------------------------------------------------------------

def _conv_ref(x, p, relu):
    xf = x.astype(jnp.float32)
    kh, kw, s = p['kh'], p['kw'], p['stride']
    pt, pb, pw_l, pw_r = p['pad']
    N, H, W, Ci = x.shape
    Ho = (H + pt + pb - kh) // s + 1
    Wo = (W + pw_l + pw_r - kw) // s + 1
    Co = p['wm'].shape[1]
    wf = p['wm'].astype(jnp.float32).reshape(kh, kw, Ci, Co)
    xp = jnp.pad(xf, ((0, 0), (pt, pb), (pw_l, pw_r), (0, 0)))
    out = jnp.zeros((N, Ho, Wo, Co), jnp.float32)
    for dy in range(kh):
        for dx in range(kw):
            sl = xp[:, dy:dy + (Ho - 1) * s + 1:s, dx:dx + (Wo - 1) * s + 1:s, :]
            out = out + jnp.einsum('nhwc,cd->nhwd', sl, wf[dy, dx],
                                   precision=jax.lax.Precision.HIGHEST)
    out = out + p['bias']
    return jnp.maximum(out, 0.0) if relu else out


def _deconv_ref(x, w_t, scale, bias):
    """Explicit ConvTranspose2d(4,4,s=2,p=1) + BN + ReLU reference (scatter form)."""
    xf = x.astype(jnp.float32)
    N, H, W, Ci = x.shape
    Co = w_t.shape[1]
    buf = jnp.zeros((N, 2 * H + 3, 2 * W + 3, Co), jnp.float32)
    for ky in range(4):
        for kx in range(4):
            contrib = jnp.einsum('nhwc,cd->nhwd', xf, w_t[:, :, ky, kx],
                                 precision=jax.lax.Precision.HIGHEST)
            buf = buf.at[:, ky:ky + 2 * H:2, kx:kx + 2 * W:2, :].add(contrib)
    out = buf[:, 1:1 + 2 * H, 1:1 + 2 * W, :]
    return jnp.maximum(out * scale + bias, 0.0)


if __name__ == "__main__":
    NUM_JOINTS = 17   # len(flip_index)
    params = make_resnet50(NUM_JOINTS)

    # --- numerical self-checks of the new conv / deconv kernels ---------------
    key = jax.random.PRNGKey(0)
    # stride-1 3x3 conv: Ci>=128 (in-kernel 2D taps) and Ci<128 (kw-fold) paths
    for ci, co in ((128, 128), (64, 64)):
        xt = jax.random.normal(jax.random.fold_in(key, ci),
                               (1, 9, 7, ci), jnp.float32).astype(jnp.bfloat16)
        pc = prep_conv(conv_w(co, ci, 3, 3), *bn_scale_bias(co), pad=(1, 1, 1, 1))
        got = conv_bn(xt, pc, relu=True).astype(jnp.float32)
        ref = _conv_ref(xt, pc, relu=True)
        err = float(jnp.max(jnp.abs(got - ref)) / (jnp.max(jnp.abs(ref)) + 1e-6))
        assert err < 3e-2, ("tap_conv mismatch", ci, err)
    # fused ConvTranspose(4,4,2,1)+BN+ReLU vs explicit reference
    ci, co = 64, 128
    xt = jax.random.normal(jax.random.fold_in(key, 7),
                           (1, 5, 3, ci), jnp.float32).astype(jnp.bfloat16)
    w_t = jax.random.normal(jax.random.fold_in(key, 8), (ci, co, 4, 4), jnp.float32) * 0.1
    w_t = w_t.astype(jnp.bfloat16).astype(jnp.float32)
    sc, bi = bn_scale_bias(co)
    got = deconv_bn(xt, prep_deconv_fused(w_t, sc, bi)).astype(jnp.float32)
    ref = _deconv_ref(xt, w_t, sc, bi)
    err = float(jnp.max(jnp.abs(got - ref)) / (jnp.max(jnp.abs(ref)) + 1e-6))
    assert err < 3e-2, ("deconv mismatch", err)

    # --- full forward pass ------------------------------------------------------
    img = jax.random.normal(jax.random.PRNGKey(0), (2, 3, 64, 64), jnp.float32)
    fwd = jax.jit(lambda im: resnet_forward(params, im))
    heat = jax.block_until_ready(fwd(img)[0])

    assert heat.shape == (2, NUM_JOINTS, 16, 16), heat.shape
    assert bool(jnp.all(jnp.isfinite(heat)))
    print("KERNEL_OK")
</pallas_src>

<mosaic_0001>
module attributes {stable_mosaic.version = 11 : i64} {
  func.func @_tap_conv_kernel(%arg0: i32, %arg1: i32, %arg2: i32, %arg3: memref<1x1x128x128xbf16, #tpu.memory_space<vmem>>, %arg4: memref<1152x128xbf16, #tpu.memory_space<vmem>>, %arg5: memref<1x128xf32, #tpu.memory_space<vmem>>, %arg6: memref<1x1x80x128xbf16, #tpu.memory_space<vmem>>) attributes {dimension_semantics = [#tpu.dimension_semantics<parallel>, #tpu.dimension_semantics<parallel>, #tpu.dimension_semantics<parallel>], iteration_bounds = array<i64: 1, 1, 2>, scalar_prefetch = 0 : i64, scratch_operands = 0 : i64, tpu.core_type = #tpu.core_type<tc>, window_params = [{transform_indices = @transform_0, window_bounds = array<i64: 1, 1, 128, 128>}, {transform_indices = @transform_1, window_bounds = array<i64: 1152, 128>}, {transform_indices = @transform_2, window_bounds = array<i64: 1, 128>}, {transform_indices = @transform_3, window_bounds = array<i64: 1, 1, 80, 128>}]} {
    %cst = arith.constant 0.000000e+00 : f32
    %0 = vector.broadcast %cst : f32 to vector<80x128xf32>
    %c0 = arith.constant 0 : index
    %c0_0 = arith.constant 0 : index
    %c0_1 = arith.constant 0 : index
    %c0_2 = arith.constant 0 : index
    %1 = vector.load %arg3[%c0, %c0_0, %c0_1, %c0_2] : memref<1x1x128x128xbf16, #tpu.memory_space<vmem>>, vector<1x1x80x128xbf16>
    %2 = vector.shape_cast %1 : vector<1x1x80x128xbf16> to vector<80x128xbf16>
    %c0_3 = arith.constant 0 : index
    %c0_4 = arith.constant 0 : index
    %3 = vector.load %arg4[%c0_3, %c0_4] : memref<1152x128xbf16, #tpu.memory_space<vmem>>, vector<128x128xbf16>
    %cst_5 = arith.constant dense<0.000000e+00> : vector<80x128xf32>
    %4 = tpu.matmul %2, %3, %cst_5 {dimension_numbers = #tpu.dot_dimension_numbers<[1], [0], [0], [1], [0, 0, 1, 1], [], []>} : vector<80x128xbf16>, vector<128x128xbf16>, vector<80x128xf32> -> vector<80x128xf32>
    %5 = arith.addf %0, %4 : vector<80x128xf32>
    %c0_6 = arith.constant 0 : index
    %c0_7 = arith.constant 0 : index
    %c1 = arith.constant 1 : index
    %c0_8 = arith.constant 0 : index
    %6 = vector.load %arg3[%c0_6, %c0_7, %c1, %c0_8] : memref<1x1x128x128xbf16, #tpu.memory_space<vmem>>, vector<1x1x80x128xbf16>
    %7 = vector.shape_cast %6 : vector<1x1x80x128xbf16> to vector<80x128xbf16>
    %c128 = arith.constant 128 : index
    %c0_9 = arith.constant 0 : index
    %8 = vector.load %arg4[%c128, %c0_9] : memref<1152x128xbf16, #tpu.memory_space<vmem>>, vector<128x128xbf16>
    %cst_10 = arith.constant dense<0.000000e+00> : vector<80x128xf32>
    %9 = tpu.matmul %7, %8, %cst_10 {dimension_numbers = #tpu.dot_dimension_numbers<[1], [0], [0], [1], [0, 0, 1, 1], [], []>} : vector<80x128xbf16>, vector<128x128xbf16>, vector<80x128xf32> -> vector<80x128xf32>
    %10 = arith.addf %5, %9 : vector<80x128xf32>
    %c0_11 = arith.constant 0 : index
    %c0_12 = arith.constant 0 : index
    %c2 = arith.constant 2 : index
    %c0_13 = arith.constant 0 : index
    %11 = vector.load %arg3[%c0_11, %c0_12, %c2, %c0_13] : memref<1x1x128x128xbf16, #tpu.memory_space<vmem>>, vector<1x1x80x128xbf16>
    %12 = vector.shape_cast %11 : vector<1x1x80x128xbf16> to vector<80x128xbf16>
    %c256 = arith.constant 256 : index
    %c0_14 = arith.constant 0 : index
    %13 = vector.load %arg4[%c256, %c0_14] : memref<1152x128xbf16, #tpu.memory_space<vmem>>, vector<128x128xbf16>
    %cst_15 = arith.constant dense<0.000000e+00> : vector<80x128xf32>
    %14 = tpu.matmul %12, %13, %cst_15 {dimension_numbers = #tpu.dot_dimension_numbers<[1], [0], [0], [1], [0, 0, 1, 1], [], []>} : vector<80x128xbf16>, vector<128x128xbf16>, vector<80x128xf32> -> vector<80x128xf32>
    %15 = arith.addf %10, %14 : vector<80x128xf32>
    %c0_16 = arith.constant 0 : index
    %c0_17 = arith.constant 0 : index
    %c16 = arith.constant 16 : index
    %c0_18 = arith.constant 0 : index
    %16 = vector.load %arg3[%c0_16, %c0_17, %c16, %c0_18] : memref<1x1x128x128xbf16, #tpu.memory_space<vmem>>, vector<1x1x80x128xbf16>
    %17 = vector.shape_cast %16 : vector<1x1x80x128xbf16> to vector<80x128xbf16>
    %c384 = arith.constant 384 : index
    %c0_19 = arith.constant 0 : index
    %18 = vector.load %arg4[%c384, %c0_19] : memref<1152x128xbf16, #tpu.memory_space<vmem>>, vector<128x128xbf16>
    %cst_20 = arith.constant dense<0.000000e+00> : vector<80x128xf32>
    %19 = tpu.matmul %17, %18, %cst_20 {dimension_numbers = #tpu.dot_dimension_numbers<[1], [0], [0], [1], [0, 0, 1, 1], [], []>} : vector<80x128xbf16>, vector<128x128xbf16>, vector<80x128xf32> -> vector<80x128xf32>
    %20 = arith.addf %15, %19 : vector<80x128xf32>
    %c0_21 = arith.constant 0 : index
    %c0_22 = arith.constant 0 : index
    %c17 = arith.constant 17 : index
    %c0_23 = arith.constant 0 : index
    %21 = vector.load %arg3[%c0_21, %c0_22, %c17, %c0_23] : memref<1x1x128x128xbf16, #tpu.memory_space<vmem>>, vector<1x1x80x128xbf16>
    %22 = vector.shape_cast %21 : vector<1x1x80x128xbf16> to vector<80x128xbf16>
    %c512 = arith.constant 512 : index
    %c0_24 = arith.constant 0 : index
    %23 = vector.load %arg4[%c512, %c0_24] : memref<1152x128xbf16, #tpu.memory_space<vmem>>, vector<128x128xbf16>
    %cst_25 = arith.constant dense<0.000000e+00> : vector<80x128xf32>
    %24 = tpu.matmul %22, %23, %cst_25 {dimension_numbers = #tpu.dot_dimension_numbers<[1], [0], [0], [1], [0, 0, 1, 1], [], []>} : vector<80x128xbf16>, vector<128x128xbf16>, vector<80x128xf32> -> vector<80x128xf32>
    %25 = arith.addf %20, %24 : vector<80x128xf32>
    %c0_26 = arith.constant 0 : index
    %c0_27 = arith.constant 0 : index
    %c18 = arith.constant 18 : index
    %c0_28 = arith.constant 0 : index
    %26 = vector.load %arg3[%c0_26, %c0_27, %c18, %c0_28] : memref<1x1x128x128xbf16, #tpu.memory_space<vmem>>, vector<1x1x80x128xbf16>
    %27 = vector.shape_cast %26 : vector<1x1x80x128xbf16> to vector<80x128xbf16>
    %c640 = arith.constant 640 : index
    %c0_29 = arith.constant 0 : index
    %28 = vector.load %arg4[%c640, %c0_29] : memref<1152x128xbf16, #tpu.memory_space<vmem>>, vector<128x128xbf16>
    %cst_30 = arith.constant dense<0.000000e+00> : vector<80x128xf32>
    %29 = tpu.matmul %27, %28, %cst_30 {dimension_numbers = #tpu.dot_dimension_numbers<[1], [0], [0], [1], [0, 0, 1, 1], [], []>} : vector<80x128xbf16>, vector<128x128xbf16>, vector<80x128xf32> -> vector<80x128xf32>
    %30 = arith.addf %25, %29 : vector<80x128xf32>
    %c0_31 = arith.constant 0 : index
    %c0_32 = arith.constant 0 : index
    %c32 = arith.constant 32 : index
    %c0_33 = arith.constant 0 : index
    %31 = vector.load %arg3[%c0_31, %c0_32, %c32, %c0_33] : memref<1x1x128x128xbf16, #tpu.memory_space<vmem>>, vector<1x1x80x128xbf16>
    %32 = vector.shape_cast %31 : vector<1x1x80x128xbf16> to vector<80x128xbf16>
    %c768 = arith.constant 768 : index
    %c0_34 = arith.constant 0 : index
    %33 = vector.load %arg4[%c768, %c0_34] : memref<1152x128xbf16, #tpu.memory_space<vmem>>, vector<128x128xbf16>
    %cst_35 = arith.constant dense<0.000000e+00> : vector<80x128xf32>
    %34 = tpu.matmul %32, %33, %cst_35 {dimension_numbers = #tpu.dot_dimension_numbers<[1], [0], [0], [1], [0, 0, 1, 1], [], []>} : vector<80x128xbf16>, vector<128x128xbf16>, vector<80x128xf32> -> vector<80x128xf32>
    %35 = arith.addf %30, %34 : vector<80x128xf32>
    %c0_36 = arith.constant 0 : index
    %c0_37 = arith.constant 0 : index
    %c33 = arith.constant 33 : index
    %c0_38 = arith.constant 0 : index
    %36 = vector.load %arg3[%c0_36, %c0_37, %c33, %c0_38] : memref<1x1x128x128xbf16, #tpu.memory_space<vmem>>, vector<1x1x80x128xbf16>
    %37 = vector.shape_cast %36 : vector<1x1x80x128xbf16> to vector<80x128xbf16>
    %c896 = arith.constant 896 : index
    %c0_39 = arith.constant 0 : index
    %38 = vector.load %arg4[%c896, %c0_39] : memref<1152x128xbf16, #tpu.memory_space<vmem>>, vector<128x128xbf16>
    %cst_40 = arith.constant dense<0.000000e+00> : vector<80x128xf32>
    %39 = tpu.matmul %37, %38, %cst_40 {dimension_numbers = #tpu.dot_dimension_numbers<[1], [0], [0], [1], [0, 0, 1, 1], [], []>} : vector<80x128xbf16>, vector<128x128xbf16>, vector<80x128xf32> -> vector<80x128xf32>
    %40 = arith.addf %35, %39 : vector<80x128xf32>
    %c0_41 = arith.constant 0 : index
    %c0_42 = arith.constant 0 : index
    %c34 = arith.constant 34 : index
    %c0_43 = arith.constant 0 : index
    %41 = vector.load %arg3[%c0_41, %c0_42, %c34, %c0_43] : memref<1x1x128x128xbf16, #tpu.memory_space<vmem>>, vector<1x1x80x128xbf16>
    %42 = vector.shape_cast %41 : vector<1x1x80x128xbf16> to vector<80x128xbf16>
    %c1024 = arith.constant 1024 : index
    %c0_44 = arith.constant 0 : index
    %43 = vector.load %arg4[%c1024, %c0_44] : memref<1152x128xbf16, #tpu.memory_space<vmem>>, vector<128x128xbf16>
    %cst_45 = arith.constant dense<0.000000e+00> : vector<80x128xf32>
    %44 = tpu.matmul %42, %43, %cst_45 {dimension_numbers = #tpu.dot_dimension_numbers<[1], [0], [0], [1], [0, 0, 1, 1], [], []>} : vector<80x128xbf16>, vector<128x128xbf16>, vector<80x128xf32> -> vector<80x128xf32>
    %45 = arith.addf %40, %44 : vector<80x128xf32>
    %c0_46 = arith.constant 0 : index
    %c0_47 = arith.constant 0 : index
    %46 = vector.load %arg5[%c0_46, %c0_47] : memref<1x128xf32, #tpu.memory_space<vmem>>, vector<1x128xf32>
    %47 = vector.broadcast %46 : vector<1x128xf32> to vector<80x128xf32>
    %48 = arith.addf %45, %47 : vector<80x128xf32>
    %cst_48 = arith.constant 0.000000e+00 : f32
    %49 = vector.broadcast %cst_48 : f32 to vector<80x128xf32>
    %50 = arith.maximumf %48, %49 : vector<80x128xf32>
    %51 = arith.truncf %50 : vector<80x128xf32> to vector<80x128xbf16>
    %c0_49 = arith.constant 0 : index
    %c0_50 = arith.constant 0 : index
    %c0_51 = arith.constant 0 : index
    %c0_52 = arith.constant 0 : index
    %52 = vector.load %arg6[%c0_49, %c0_50, %c0_51, %c0_52] : memref<1x1x80x128xbf16, #tpu.memory_space<vmem>>, vector<1x1x80x128xbf16>
    %53 = vector.shape_cast %52 : vector<1x1x80x128xbf16> to vector<80x128xbf16>
    %54 = vector.shape_cast %51 : vector<80x128xbf16> to vector<1x1x80x128xbf16>
    tpu.vector_store %arg6[%c0_49, %c0_50, %c0_51, %c0_52], %54 {strides = array<i32>} : memref<1x1x80x128xbf16, #tpu.memory_space<vmem>>, vector<1x1x80x128xbf16>,
    return
  }
  func.func @transform_0(%arg0: i32, %arg1: i32, %arg2: i32) -> (i32, i32, i32, i32) {
    %c0_i32 = arith.constant 0 : i32
    %c0_i32_0 = arith.constant 0 : i32
    %c0_i32_1 = arith.constant 0 : i32
    return %arg0, %arg2, %c0_i32, %c0_i32_0 : i32, i32, i32, i32
  }
  func.func @transform_1(%arg0: i32, %arg1: i32, %arg2: i32) -> (i32, i32) {
    %c0_i32 = arith.constant 0 : i32
    %c0_i32_0 = arith.constant 0 : i32
    return %c0_i32, %arg1 : i32, i32
  }
  func.func @transform_2(%arg0: i32, %arg1: i32, %arg2: i32) -> (i32, i32) {
    %c0_i32 = arith.constant 0 : i32
    %c0_i32_0 = arith.constant 0 : i32
    return %c0_i32, %arg1 : i32, i32
  }
  func.func @transform_3(%arg0: i32, %arg1: i32, %arg2: i32) -> (i32, i32, i32, i32) {
    %c0_i32 = arith.constant 0 : i32
    %c0_i32_0 = arith.constant 0 : i32
    return %arg0, %arg2, %c0_i32, %arg1 : i32, i32, i32, i32
  }
}

</mosaic_0001>

<llo_original>
// kernel: tpu_custom_call.1
$region0: #{tpu_custom_call.1}
  #allocation0 [shape = 'u32[]', space=smem, size = 0x4, offset = 0x4, fixed_abs, tag = 'smem constant byte address 0x4 - core index']
  #allocation1 [shape = 'u32[144,128]{1,0:T(1,128)}', space=vmem, size = 0x12000, scoped, tag = 'internal scratch']
  %s0 = inlined_call_operand.hbm [shape: bf16[1,2,128,128], index: 0, kind: input, shape index: {}]
  %s1 = inlined_call_operand.hbm [shape: bf16[1152,128], index: 1, kind: input, shape index: {}]
  %s2 = inlined_call_operand.vmem [shape: f32[1,128], index: 2, kind: input, shape index: {}]
  %s3 = inlined_call_operand.hbm [shape: bf16[1,2,80,128], index: 3, kind: output, shape index: {}]
  %s4 = sld [smem:[#allocation0]]
  $region53: #{tpu_custom_call.1} parent=0
    _
  %s6 = ssub.s32 1, %s4
  %s7 = scalar_select 0, %s6, %s4
  $region1: #{tpu_custom_call.1} parent=0
    #allocation2 [shape = 'u8[65536]{0}', space=vmem, size = 0x10000, scoped, tag = 'input window, operand 0']
    #allocation3 [shape = 's32[2]{0}', space=sflag, size = 0x8, scoped, tag = 'scoped memory for tpu_custom_call.1']
    #allocation4 [shape = 's32[2]{0}', space=sflag, size = 0x8, scoped, tag = 'scoped memory for tpu_custom_call.1']
    #allocation5 [shape = 'u8[294912]{0}', space=vmem, size = 0x48000, scoped, tag = 'input window, operand 1, single buffered']
    #allocation6 [shape = 's32[1]{0}', space=sflag, size = 0x4, scoped, tag = 'scoped memory for tpu_custom_call.1']
    #allocation7 [shape = 'u8[40960]{0}', space=vmem, size = 0xa000, scoped, tag = 'output window, operand 0']
    %8 = vsyncpa [#allocation3], 0
    %s9 = scalar_lea.sflag [#allocation3], 1
    %10 = vsyncpa %s9, 0
    %11 = vsyncpa [#allocation6], 0
    %12 = vsyncpa [#allocation4], 0
    %s13 = scalar_lea.sflag [#allocation4], 1
    %14 = vsyncpa %s13, 0
    loop: start=0, step=1, limit=4
    $region2: #{tpu_custom_call.1} parent=1 // loop_pre_header
      _
    $region3: #{tpu_custom_call.1} parent=1 // loop_header
      %s16 = sphi 0, %s20
      %p17 = scmp.ge.s32.totalorder %s16, 4
      %s23 = sphi 0, %s42
      %s24 = sphi 0, %s38
      %s25 = sphi 0, %s34
      %s26 = sphi 0, %s23
      %s27 = sphi 0, %s24
      %s28 = sphi 0, %s25
      %s29 = sphi 0, %s26
      %s30 = sphi 0, %s27
      %s31 = sphi 0, %s28
      %s47 = sphi 0, %s49
      %s50 = sphi 0, %s47
      %s51 = sphi 0, %s50
      %s67 = sphi 0, %s51
      %s73 = sphi 0, %s75
      %s76 = sphi 0, %s73
      %s77 = sphi 0, %s76
      %s93 = sphi 0, %s77
      %s99 = sphi 0, %s101
      %s102 = sphi 0, %s99
      %s103 = sphi 0, %s102
      %s119 = sphi 0, %s103
      %s129 = sphi 0, %s131
      %s132 = sphi 0, %s129
      %s133 = sphi 0, %s132
      %s149 = sphi 0, %s133
    $region4: #{tpu_custom_call.1} parent=1 // loop_header_branch
      %19 = sbr.rel (%p17) target = $region8
    $region5: #{tpu_custom_call.1} parent=1 // loop_body
      %s21 = ssub.s32 %s16, 1
      %s22 = ssub.s32 %s16, 2
      %s32 = sadd.s32 1, %s25
      %p33 = scmp.ge.s32.totalorder %s32, 2
      %s34 = scalar_select %p33, 0, %s32
      %s35 = sadd.s32 1, %s24
      %s36 = scalar_select %p33, %s35, %s24
      %p37 = scmp.ge.s32.totalorder %s36, 1
      %s38 = scalar_select %p37, 0, %s36
      %s39 = sadd.s32 1, %s23
      %s40 = scalar_select %p37, %s39, %s23
      %p41 = scmp.ge.s32.totalorder %s40, 1
      %s42 = scalar_select %p41, 0, %s40
      %s43 = ssub.s32 %s23, %s42
      %s44 = ssub.s32 %s25, %s34
      %s45 = sor.u32 %s43, %s44
      %p46 = scmp.eq.s32.totalorder %s45, 0
      %s48 = sadd.s32 %s47, 1
      %s49 = scalar_select %p46, %s47, %s48
      %p52 = pneg %p46
      %p53 = scmp.eq.s32.totalorder %s16, 1
      %p54 = por %p52, %p53
      %p55 = scmp.ne.s32.totalorder %s47, %s50
      %p56 = scmp.eq.s32.totalorder %s16, 0
      %p57 = por %p55, %p56
      %p58 = scmp.ne.s32.totalorder %s47, %s50
      %p59 = scmp.eq.s32.totalorder %s21, 1
      %p60 = por %p58, %p59
      %p61 = scmp.ne.s32.totalorder %s50, %s51
      %p62 = scmp.eq.s32.totalorder %s21, 0
      %p63 = por %p61, %p62
      %p64 = scmp.ne.s32.totalorder %s50, %s51
      %p65 = scmp.eq.s32.totalorder %s22, 1
      %p66 = por %p64, %p65
      %p68 = scmp.ne.s32.totalorder %s51, %s67
      %p69 = scmp.eq.s32.totalorder %s22, 0
      %p70 = por %p68, %p69
      %s71 = ssub.s32 %s24, %s38
      %p72 = scmp.eq.s32.totalorder %s71, 0
      %s74 = sadd.s32 %s73, 1
      %s75 = scalar_select %p72, %s73, %s74
      %p78 = pneg %p72
      %p79 = scmp.eq.s32.totalorder %s16, 1
      %p80 = por %p78, %p79
      %p81 = scmp.ne.s32.totalorder %s73, %s76
      %p82 = scmp.eq.s32.totalorder %s16, 0
      %p83 = por %p81, %p82
      %p84 = scmp.ne.s32.totalorder %s73, %s76
      %p85 = scmp.eq.s32.totalorder %s21, 1
      %p86 = por %p84, %p85
      %p87 = scmp.ne.s32.totalorder %s76, %s77
      %p88 = scmp.eq.s32.totalorder %s21, 0
      %p89 = por %p87, %p88
      %p90 = scmp.ne.s32.totalorder %s76, %s77
      %p91 = scmp.eq.s32.totalorder %s22, 1
      %p92 = por %p90, %p91
      %p94 = scmp.ne.s32.totalorder %s77, %s93
      %p95 = scmp.eq.s32.totalorder %s22, 0
      %p96 = por %p94, %p95
      %s97 = ssub.s32 %s24, %s38
      %p98 = scmp.eq.s32.totalorder %s97, 0
      %s100 = sadd.s32 %s99, 1
      %s101 = scalar_select %p98, %s99, %s100
      %p104 = pneg %p98
      %p105 = scmp.eq.s32.totalorder %s16, 1
      %p106 = por %p104, %p105
      %p107 = scmp.ne.s32.totalorder %s99, %s102
      %p108 = scmp.eq.s32.totalorder %s16, 0
      %p109 = por %p107, %p108
      %p110 = scmp.ne.s32.totalorder %s99, %s102
      %p111 = scmp.eq.s32.totalorder %s21, 1
      %p112 = por %p110, %p111
      %p113 = scmp.ne.s32.totalorder %s102, %s103
      %p114 = scmp.eq.s32.totalorder %s21, 0
      %p115 = por %p113, %p114
      %p116 = scmp.ne.s32.totalorder %s102, %s103
      %p117 = scmp.eq.s32.totalorder %s22, 1
      %p118 = por %p116, %p117
      %p120 = scmp.ne.s32.totalorder %s103, %s119
      %p121 = scmp.eq.s32.totalorder %s22, 0
      %p122 = por %p120, %p121
      %s123 = ssub.s32 %s23, %s42
      %s124 = ssub.s32 %s25, %s34
      %s125 = sor.u32 %s123, %s124
      %s126 = ssub.s32 %s24, %s38
      %s127 = sor.u32 %s125, %s126
      %p128 = scmp.eq.s32.totalorder %s127, 0
      %s130 = sadd.s32 %s129, 1
      %s131 = scalar_select %p128, %s129, %s130
      %p134 = pneg %p128
      %p135 = scmp.eq.s32.totalorder %s16, 1
      %p136 = por %p134, %p135
      %p137 = scmp.ne.s32.totalorder %s129, %s132
      %p138 = scmp.eq.s32.totalorder %s16, 0
      %p139 = por %p137, %p138
      %p140 = scmp.ne.s32.totalorder %s129, %s132
      %p141 = scmp.eq.s32.totalorder %s21, 1
      %p142 = por %p140, %p141
      %p143 = scmp.ne.s32.totalorder %s132, %s133
      %p144 = scmp.eq.s32.totalorder %s21, 0
      %p145 = por %p143, %p144
      %p146 = scmp.ne.s32.totalorder %s132, %s133
      %p147 = scmp.eq.s32.totalorder %s22, 1
      %p148 = por %p146, %p147
      %p150 = scmp.ne.s32.totalorder %s133, %s149
      %p151 = scmp.eq.s32.totalorder %s22, 0
      %p152 = por %p150, %p151
      %p153 = scmp.le.s32.totalorder 1, %s16
      %p154 = scmp.lt.s32.totalorder %s16, 3
      %p155 = pnand %p153, %p154
      %p156 = pneg %p155
      // Predicated region
      $region9: #{tpu_custom_call.1} parent=5 // pred_check
        _
      $region10: #{tpu_custom_call.1} parent=5 // pred_check_branch
        %158 = sbr.rel (%p155) target = $region12
      $region11: #{tpu_custom_call.1} parent=5 // pred_region
        %s159 = ssub.s32 %s16, 1
        // Predicated region
        $region13: #{tpu_custom_call.1} parent=11 // pred_check
          %p160 = pneg %p89
        $region14: #{tpu_custom_call.1} parent=11 // pred_check_branch
          %162 = sbr.rel (%p160) target = $region16
        $region15: #{tpu_custom_call.1} parent=11 // pred_region
          %s164 = ssub.s32 9216, 9216
          %165 = vsyncadd [#allocation6], %s164
          %s166 = smul.addr %s27, 64
          %s167 = scalar_lea.hbm %s1, %s166
          %s168 = sshll.u32 [#allocation5], 4
          %s169 = int_to_ptr.vmem [resolvable:$true] %s168
          %174 = dma.hbm_to_vmem [thread:$0]  %s167, 9216, %s169, [#allocation6], 64, 64, 4
        $region16: #{tpu_custom_call.1} parent=11 // pred_fallthru
          _
        // Predicated region
        $region17: #{tpu_custom_call.1} parent=11 // pred_check
          %p175 = pneg %p115
        $region18: #{tpu_custom_call.1} parent=11 // pred_check_branch
          %177 = sbr.rel (%p175) target = $region20
        $region19: #{tpu_custom_call.1} parent=11 // pred_region
          %p178 = scmp.lt.s32.totalorder %s27, 0
          %s179 = scalar_select %p178, %s27, 0
          %s180 = scalar_lea.vmem %s2, %s179
        $region20: #{tpu_custom_call.1} parent=11 // pred_fallthru
          _
      $region12: #{tpu_custom_call.1} parent=5 // pred_fallthru
        _
      %p181 = scmp.lt.s32.totalorder %s16, 2
      // Predicated region
      $region21: #{tpu_custom_call.1} parent=5 // pred_check
        %p182 = pneg %p181
      $region22: #{tpu_custom_call.1} parent=5 // pred_check_branch
        %184 = sbr.rel (%p182) target = $region24
      $region23: #{tpu_custom_call.1} parent=5 // pred_region
        // Predicated region
        $region25: #{tpu_custom_call.1} parent=23 // pred_check
          %p185 = pneg %p57
        $region26: #{tpu_custom_call.1} parent=23 // pred_check_branch
          %187 = sbr.rel (%p185) target = $region28
        $region27: #{tpu_custom_call.1} parent=23 // pred_region
          %s188 = sand.u32 %s47, 1
          %s189 = scalar_lea.sflag [#allocation3], %s188
          %s190 = sand.u32 %s47, 1
          %s191 = smul.addr %s190, 64
          %s192 = scalar_lea.vmem [#allocation2], %s191
          %s194 = ssub.s32 1024, 1024
          %195 = vsyncadd %s189, %s194
          %s196 = smul.addr %s25, 16
          %s197 = smul.addr %s23, 32
          %s198 = sadd.s32 %s196, %s197
          %s199 = smul.addr %s198, 64
          %s200 = scalar_lea.hbm %s0, %s199
          %s201 = sshll.u32 %s192, 4
          %s202 = int_to_ptr.vmem [resolvable:$true] %s201
          %207 = dma.hbm_to_vmem [thread:$0]  %s200, 1024, %s202, %s189, 64, 64, 4
        $region28: #{tpu_custom_call.1} parent=23 // pred_fallthru
          _
      $region24: #{tpu_custom_call.1} parent=5 // pred_fallthru
        _
      %p208 = scmp.le.s32.totalorder 1, %s16
      %p209 = scmp.lt.s32.totalorder %s16, 3
      %p210 = pnand %p208, %p209
      %p211 = pneg %p210
      // Predicated region
      $region29: #{tpu_custom_call.1} parent=5 // pred_check
        _
      $region30: #{tpu_custom_call.1} parent=5 // pred_check_branch
        %213 = sbr.rel (%p210) target = $region32
      $region31: #{tpu_custom_call.1} parent=5 // pred_region
        %s214 = ssub.s32 %s16, 1
        %s215 = sand.u32 %s50, 1
        %s216 = scalar_lea.sflag [#allocation3], %s215
        %s217 = sand.u32 %s50, 1
        %s218 = smul.addr %s217, 64
        %s219 = scalar_lea.vmem [#allocation2], %s218
        // Predicated region
        $region33: #{tpu_custom_call.1} parent=31 // pred_check
          %p220 = pneg %p63
        $region34: #{tpu_custom_call.1} parent=31 // pred_check_branch
          %222 = sbr.rel (%p220) target = $region36
        $region35: #{tpu_custom_call.1} parent=31 // pred_region
          %223 = dma.done %s216, 1024
        $region36: #{tpu_custom_call.1} parent=31 // pred_fallthru
          _
        // Predicated region
        $region37: #{tpu_custom_call.1} parent=31 // pred_check
          %p224 = pneg %p89
        $region38: #{tpu_custom_call.1} parent=31 // pred_check_branch
          %226 = sbr.rel (%p224) target = $region40
        $region39: #{tpu_custom_call.1} parent=31 // pred_region
          %227 = dma.done [#allocation6], 9216
        $region40: #{tpu_custom_call.1} parent=31 // pred_fallthru
          _
        %s228 = sand.u32 %s50, 1
        %s229 = scalar_lea.sflag [#allocation3], %s228
        %s230 = sand.u32 %s50, 1
        %s231 = smul.addr %s230, 64
        %s232 = scalar_lea.vmem [#allocation2], %s231
        %p233 = pneg %p63
        %p234 = pneg %p60
        %p235 = pneg %p89
        %p236 = pneg %p86
        %p237 = scmp.lt.s32.totalorder %s27, 0
        %s238 = scalar_select %p237, %s27, 0
        %s239 = scalar_lea.vmem %s2, %s238
        %p240 = pneg %p115
        %p241 = pneg %p112
        %p242 = pneg %p145
        %p243 = pneg %p142
        %s244 = sand.u32 %s132, 1
        %s245 = scalar_lea.sflag [#allocation4], %s244
        %s246 = sand.u32 %s132, 1
        %s247 = smul.addr %s246, 40
        %s248 = scalar_lea.vmem [#allocation7], %s247
        %p249 = scmp.lt.s32.totalorder %s27, 0
        %s250 = scalar_select %p249, %s27, 0
        %s251 = scalar_lea.vmem %s2, %s250
        %v253 = vld [vmem:[%s219] sm:$0xf]
        %v254 = vld [vmem:[%s219 + $0x4] sm:$0xf]
        %v255 = vld [vmem:[%s219 + $0x8] sm:$0xf]
        %v256 = vld [vmem:[%s219 + $0xc] sm:$0xf]
        %v257 = vld [vmem:[%s219 + $0x10] sm:$0xf]
        %v258 = vld [vmem:[%s219 + $0x14] sm:$0xf]
        %v259 = vld [vmem:[%s219 + $0x18] sm:$0xf]
        %v260 = vld [vmem:[%s219 + $0x1c] sm:$0xf]
        %v261 = vld [vmem:[%s219 + $0x20] sm:$0xf]
        %v262 = vld [vmem:[%s219 + $0x24] sm:$0xf]
        %v263 = vld [vmem:[#allocation5] sm:$0xf]
        %v264 = vld [vmem:[#allocation5 + $0x4] sm:$0xf]
        %v265 = vld [vmem:[#allocation5 + $0x8] sm:$0xf]
        %v266 = vld [vmem:[#allocation5 + $0xc] sm:$0xf]
        %v267 = vld [vmem:[#allocation5 + $0x10] sm:$0xf]
        %v268 = vld [vmem:[#allocation5 + $0x14] sm:$0xf]
        %v269 = vld [vmem:[#allocation5 + $0x18] sm:$0xf]
        %v270 = vld [vmem:[#allocation5 + $0x1c] sm:$0xf]
        %v271 = vld [vmem:[#allocation5 + $0x20] sm:$0xf]
        %v272 = vld [vmem:[#allocation5 + $0x24] sm:$0xf]
        %v273 = vld [vmem:[#allocation5 + $0x28] sm:$0xf]
        %v274 = vld [vmem:[#allocation5 + $0x2c] sm:$0xf]
        %v275 = vld [vmem:[#allocation5 + $0x30] sm:$0xf]
        %v276 = vld [vmem:[#allocation5 + $0x34] sm:$0xf]
        %v277 = vld [vmem:[#allocation5 + $0x38] sm:$0xf]
        %v278 = vld [vmem:[#allocation5 + $0x3c] sm:$0xf]
        %v279 = vld [vmem:[%s219 + $0x28] sm:$0x1]
        %v280 = vld [vmem:[#allocation5 + $0x40] sm:$0xf]
        %v281 = vld [vmem:[#allocation5 + $0x44] sm:$0xf]
        %v282 = vld [vmem:[#allocation5 + $0x48] sm:$0xf]
        %v283 = vld [vmem:[#allocation5 + $0x4c] sm:$0xf]
        %v284 = vld [vmem:[#allocation5 + $0x50] sm:$0xf]
        %v285 = vld [vmem:[#allocation5 + $0x54] sm:$0xf]
        %v286 = vld [vmem:[#allocation5 + $0x58] sm:$0xf]
        %v287 = vld [vmem:[#allocation5 + $0x5c] sm:$0xf]
        %v288 = vld [vmem:[#allocation5 + $0x60] sm:$0xf]
        %v289 = vld [vmem:[#allocation5 + $0x64] sm:$0xf]
        %v290 = vld [vmem:[#allocation5 + $0x68] sm:$0xf]
        %v291 = vld [vmem:[#allocation5 + $0x6c] sm:$0xf]
        %v292 = vld [vmem:[#allocation5 + $0x70] sm:$0xf]
        %v293 = vld [vmem:[#allocation5 + $0x74] sm:$0xf]
        %v294 = vld [vmem:[#allocation5 + $0x78] sm:$0xf]
        %v295 = vld [vmem:[#allocation5 + $0x7c] sm:$0xf]
        %v307 = vunpack.c.l.b16 %v253
        %v308 = vunpack.c.l.b16 %v254
        %v309 = vunpack.c.l.b16 %v255
        %v310 = vunpack.c.l.b16 %v256
        %v311 = vunpack.c.l.b16 %v257
        %v312 = vunpack.c.l.b16 %v258
        %v313 = vunpack.c.l.b16 %v259
        %v314 = vunpack.c.l.b16 %v260
        %v315 = vunpack.c.l.b16 %v261
        %v316 = vunpack.c.l.b16 %v262
        %v317 = vunpack.c.l.b16 %v279
        %v318 = vpack.c.b16 %v308, %v307
        %v319 = vpack.c.b16 %v310, %v309
        %v320 = vpack.c.b16 %v312, %v311
        %v321 = vpack.c.b16 %v314, %v313
        %v322 = vpack.c.b16 %v316, %v315
        %v323 = vpack.c.b16 %v317, %v317
        %vm324 = vsmask.f32 7424
        %v326 = vshrl.u32 %v318, 16
        %v328 = vshll.u32 %v318, 16
        %v330 = vrot.slane %v328, 1
        %v331 = vor.u32 %v326, %v330
        %v333 = vshll.u32 %v319, 16
        %v335 = vrot.slane %v333, 1
        %v336 = vsel %vm324, %v331, %v335
        %v337 = vshrl.u32 %v319, 16
        %v339 = vor.u32 %v337, %v335
        %v341 = vshll.u32 %v320, 16
        %v343 = vrot.slane %v341, 1
        %v344 = vsel %vm324, %v339, %v343
        %v345 = vshrl.u32 %v320, 16
        %v347 = vor.u32 %v345, %v343
        %v349 = vshll.u32 %v321, 16
        %v351 = vrot.slane %v349, 1
        %v352 = vsel %vm324, %v347, %v351
        %v353 = vshrl.u32 %v321, 16
        %v355 = vor.u32 %v353, %v351
        %v357 = vshll.u32 %v322, 16
        %v359 = vrot.slane %v357, 1
        %v360 = vsel %vm324, %v355, %v359
        %v361 = vshrl.u32 %v322, 16
        %v363 = vor.u32 %v361, %v359
        %v365 = vshll.u32 %v323, 16
        %v367 = vrot.slane %v365, 1
        %v368 = vsel %vm324, %v363, %v367
        %v390 = vunpack.c.l.b16 %v280
        %v391 = vunpack.c.l.b16 %v281
        %v392 = vunpack.c.l.b16 %v282
        %v393 = vunpack.c.l.b16 %v283
        %v394 = vunpack.c.l.b16 %v284
        %v395 = vunpack.c.l.b16 %v285
        %v396 = vunpack.c.l.b16 %v286
        %v397 = vunpack.c.l.b16 %v287
        %v398 = vunpack.c.l.b16 %v288
        %v399 = vunpack.c.l.b16 %v289
        %v400 = vunpack.c.l.b16 %v290
        %v401 = vunpack.c.l.b16 %v291
        %v402 = vunpack.c.l.b16 %v292
        %v403 = vunpack.c.l.b16 %v293
        %v404 = vunpack.c.l.b16 %v294
        %v405 = vunpack.c.l.b16 %v295
        %v406 = vpack.c.b16 %v391, %v390
        %v407 = vpack.c.b16 %v393, %v392
        %v408 = vpack.c.b16 %v395, %v394
        %v409 = vpack.c.b16 %v397, %v396
        %v410 = vpack.c.b16 %v399, %v398
        %v411 = vpack.c.b16 %v401, %v400
        %v412 = vpack.c.b16 %v403, %v402
        %v413 = vpack.c.b16 %v405, %v404
        %422 = vmatprep.subr.bf16.mxu0 0
        %423 = vmatpush1.bf16.msra.mxu0 %v413
        %424 = vmatprep.subr.bf16.mxu0 0
        %425 = vmatpush1.bf16.msra.mxu0 %v412
        %426 = vmatprep.subr.bf16.mxu0 0
        %427 = vmatpush1.bf16.msra.mxu0 %v411
        %428 = vmatprep.subr.bf16.mxu0 0
        %429 = vmatpush1.bf16.msra.mxu0 %v410
        %430 = vmatprep.subr.bf16.mxu0 0
        %431 = vmatpush1.bf16.msra.mxu0 %v409
        %432 = vmatprep.subr.bf16.mxu0 0
        %433 = vmatpush1.bf16.msra.mxu0 %v408
        %434 = vmatprep.subr.bf16.mxu0 0
        %435 = vmatpush1.bf16.msra.mxu0 %v407
        %436 = vmatprep.subr.bf16.mxu0 0
        %437 = vmatpush1.bf16.msra.mxu0 %v406
        %438 = vmatprep.subr.bf16.mxu0 0
        %439 = vmatpush2.bf16.msra.mxu0 0
        %440 = vmatprep.subr.bf16.mxu0 0
        %441 = vmatpush2.bf16.msra.mxu0 0
        %442 = vmatprep.subr.bf16.mxu0 0
        %443 = vmatpush2.bf16.msra.mxu0 0
        %444 = vmatprep.subr.bf16.mxu0 0
        %445 = vmatpush2.bf16.msra.mxu0 0
        %446 = vmatprep.subr.bf16.mxu0 0
        %447 = vmatpush2.bf16.msra.mxu0 0
        %448 = vmatprep.subr.bf16.mxu0 0
        %449 = vmatpush2.bf16.msra.mxu0 0
        %450 = vmatprep.subr.bf16.mxu0 0
        %451 = vmatpush2.bf16.msra.mxu0 0
        %452 = vmatprep.subr.bf16.mxu0 0
        %453 = vmatpush2.bf16.msra.mxu0 0
        %454 = vmatprep.mubr.bf16.mxu0 0
        %455 = vmatmul.mubr.bf16.gmra.mxu0 %v336
        %v456 = vpop.f32.mrf.mxu0
        %v457 = vadd.f32 0.0, %v456
        %v458 = vpop.f32.mrf.mxu0
        %v459 = vpop.f32.mrf.mxu0
        %v460 = vadd.f32 0.0, %v459
        %v461 = vpop.f32.mrf.mxu0
        %462 = vmatprep.mubr.bf16.mxu0 0
        %463 = vmatmul.mubr.bf16.gmra.mxu0 %v344
        %v464 = vpop.f32.mrf.mxu0
        %v465 = vadd.f32 0.0, %v464
        %v466 = vpop.f32.mrf.mxu0
        %v467 = vpop.f32.mrf.mxu0
        %v468 = vadd.f32 0.0, %v467
        %v469 = vpop.f32.mrf.mxu0
        %470 = vmatprep.mubr.bf16.mxu0 0
        %471 = vmatmul.mubr.bf16.gmra.mxu0 %v352
        %v472 = vpop.f32.mrf.mxu0
        %v473 = vadd.f32 0.0, %v472
        %v474 = vpop.f32.mrf.mxu0
        %v475 = vpop.f32.mrf.mxu0
        %v476 = vadd.f32 0.0, %v475
        %v477 = vpop.f32.mrf.mxu0
        %478 = vmatprep.mubr.bf16.mxu0 0
        %479 = vmatmul.mubr.bf16.gmra.mxu0 %v360
        %v480 = vpop.f32.mrf.mxu0
        %v481 = vadd.f32 0.0, %v480
        %v482 = vpop.f32.mrf.mxu0
        %v483 = vpop.f32.mrf.mxu0
        %v484 = vadd.f32 0.0, %v483
        %v485 = vpop.f32.mrf.mxu0
        %486 = vmatprep.mubr.bf16.mxu0 0
        %487 = vmatmul.mubr.bf16.gmra.mxu0 %v368
        %v488 = vpop.f32.mrf.mxu0
        %v489 = vadd.f32 0.0, %v488
        %v490 = vpop.f32.mrf.mxu0
        %v491 = vpop.f32.mrf.mxu0
        %v492 = vadd.f32 0.0, %v491
        %v493 = vpop.f32.mrf.mxu0
        %494 = vdwg.mxu0
        %v516 = vunpack.c.l.b16 %v263
        %v517 = vunpack.c.l.b16 %v264
        %v518 = vunpack.c.l.b16 %v265
        %v519 = vunpack.c.l.b16 %v266
        %v520 = vunpack.c.l.b16 %v267
        %v521 = vunpack.c.l.b16 %v268
        %v522 = vunpack.c.l.b16 %v269
        %v523 = vunpack.c.l.b16 %v270
        %v524 = vunpack.c.l.b16 %v271
        %v525 = vunpack.c.l.b16 %v272
        %v526 = vunpack.c.l.b16 %v273
        %v527 = vunpack.c.l.b16 %v274
        %v528 = vunpack.c.l.b16 %v275
        %v529 = vunpack.c.l.b16 %v276
        %v530 = vunpack.c.l.b16 %v277
        %v531 = vunpack.c.l.b16 %v278
        %v532 = vpack.c.b16 %v517, %v516
        %v533 = vpack.c.b16 %v519, %v518
        %v534 = vpack.c.b16 %v521, %v520
        %v535 = vpack.c.b16 %v523, %v522
        %v536 = vpack.c.b16 %v525, %v524
        %v537 = vpack.c.b16 %v527, %v526
        %v538 = vpack.c.b16 %v529, %v528
        %v539 = vpack.c.b16 %v531, %v530
        %548 = vmatprep.subr.bf16.mxu0 0
        %549 = vmatpush1.bf16.msra.mxu0 %v539
        %550 = vmatprep.subr.bf16.mxu0 0
        %551 = vmatpush1.bf16.msra.mxu0 %v538
        %552 = vmatprep.subr.bf16.mxu0 0
        %553 = vmatpush1.bf16.msra.mxu0 %v537
        %554 = vmatprep.subr.bf16.mxu0 0
        %555 = vmatpush1.bf16.msra.mxu0 %v536
        %556 = vmatprep.subr.bf16.mxu0 0
        %557 = vmatpush1.bf16.msra.mxu0 %v535
        %558 = vmatprep.subr.bf16.mxu0 0
        %559 = vmatpush1.bf16.msra.mxu0 %v534
        %560 = vmatprep.subr.bf16.mxu0 0
        %561 = vmatpush1.bf16.msra.mxu0 %v533
        %562 = vmatprep.subr.bf16.mxu0 0
        %563 = vmatpush1.bf16.msra.mxu0 %v532
        %564 = vmatprep.subr.bf16.mxu0 0
        %565 = vmatpush2.bf16.msra.mxu0 0
        %566 = vmatprep.subr.bf16.mxu0 0
        %567 = vmatpush2.bf16.msra.mxu0 0
        %568 = vmatprep.subr.bf16.mxu0 0
        %569 = vmatpush2.bf16.msra.mxu0 0
        %570 = vmatprep.subr.bf16.mxu0 0
        %571 = vmatpush2.bf16.msra.mxu0 0
        %572 = vmatprep.subr.bf16.mxu0 0
        %573 = vmatpush2.bf16.msra.mxu0 0
        %574 = vmatprep.subr.bf16.mxu0 0
        %575 = vmatpush2.bf16.msra.mxu0 0
        %576 = vmatprep.subr.bf16.mxu0 0
        %577 = vmatpush2.bf16.msra.mxu0 0
        %578 = vmatprep.subr.bf16.mxu0 0
        %579 = vmatpush2.bf16.msra.mxu0 0
        %580 = vmatprep.mubr.bf16.mxu0 0
        %581 = vmatmul.mubr.bf16.gmra.mxu0 %v318
        %v582 = vpop.f32.mrf.mxu0
        %v583 = vadd.f32 %v457, %v582
        %v584 = vpop.f32.mrf.mxu0
        %v585 = vpop.f32.mrf.mxu0
        %v586 = vadd.f32 %v460, %v585
        %v587 = vpop.f32.mrf.mxu0
        %588 = vmatprep.mubr.bf16.mxu0 0
        %589 = vmatmul.mubr.bf16.gmra.mxu0 %v319
        %v590 = vpop.f32.mrf.mxu0
        %v591 = vadd.f32 %v465, %v590
        %v592 = vpop.f32.mrf.mxu0
        %v593 = vpop.f32.mrf.mxu0
        %v594 = vadd.f32 %v468, %v593
        %v595 = vpop.f32.mrf.mxu0
        %596 = vmatprep.mubr.bf16.mxu0 0
        %597 = vmatmul.mubr.bf16.gmra.mxu0 %v320
        %v598 = vpop.f32.mrf.mxu0
        %v599 = vadd.f32 %v473, %v598
        %v600 = vpop.f32.mrf.mxu0
        %v601 = vpop.f32.mrf.mxu0
        %v602 = vadd.f32 %v476, %v601
        %v603 = vpop.f32.mrf.mxu0
        %604 = vmatprep.mubr.bf16.mxu0 0
        %605 = vmatmul.mubr.bf16.gmra.mxu0 %v321
        %v606 = vpop.f32.mrf.mxu0
        %v607 = vadd.f32 %v481, %v606
        %v608 = vpop.f32.mrf.mxu0
        %v609 = vpop.f32.mrf.mxu0
        %v610 = vadd.f32 %v484, %v609
        %v611 = vpop.f32.mrf.mxu0
        %612 = vmatprep.mubr.bf16.mxu0 0
        %613 = vmatmul.mubr.bf16.gmra.mxu0 %v322
        %v614 = vpop.f32.mrf.mxu0
        %v615 = vadd.f32 %v489, %v614
        %v616 = vpop.f32.mrf.mxu0
        %v617 = vpop.f32.mrf.mxu0
        %v618 = vadd.f32 %v492, %v617
        %v619 = vpop.f32.mrf.mxu0
        %620 = vdwg.mxu0
        %v621 = vld [vmem:[%s219] sm:$0xe]
        %v622 = vld [vmem:[#allocation5 + $0x80] sm:$0xf]
        %v623 = vld [vmem:[#allocation5 + $0x84] sm:$0xf]
        %v624 = vld [vmem:[#allocation5 + $0x88] sm:$0xf]
        %v625 = vld [vmem:[#allocation5 + $0x8c] sm:$0xf]
        %v626 = vld [vmem:[#allocation5 + $0x90] sm:$0xf]
        %v627 = vld [vmem:[#allocation5 + $0x94] sm:$0xf]
        %v628 = vld [vmem:[#allocation5 + $0x98] sm:$0xf]
        %v629 = vld [vmem:[#allocation5 + $0x9c] sm:$0xf]
        %v630 = vld [vmem:[#allocation5 + $0xa0] sm:$0xf]
        %v631 = vld [vmem:[#allocation5 + $0xa4] sm:$0xf]
        %v632 = vld [vmem:[#allocation5 + $0xa8] sm:$0xf]
        %v633 = vld [vmem:[#allocation5 + $0xac] sm:$0xf]
        %v634 = vld [vmem:[#allocation5 + $0xb0] sm:$0xf]
        %v635 = vld [vmem:[#allocation5 + $0xb4] sm:$0xf]
        %v636 = vld [vmem:[#allocation5 + $0xb8] sm:$0xf]
        %v637 = vld [vmem:[#allocation5 + $0xbc] sm:$0xf]
        %v639 = vunpack.c.l.b16 %v621
        %v640 = vpack.c.b16 %v308, %v639
        %vm641 = vcmask 1046528
        %v642 = vrot.slane %v640, 1
        %v643 = vrot.slane %v319, 1
        %v644 = vsel %vm641, %v642, %v643
        %v645 = vrot.slane %v320, 1
        %v646 = vsel %vm641, %v643, %v645
        %v647 = vrot.slane %v321, 1
        %v648 = vsel %vm641, %v645, %v647
        %v649 = vrot.slane %v322, 1
        %v650 = vsel %vm641, %v647, %v649
        %v651 = vrot.slane %v323, 1
        %v652 = vsel %vm641, %v649, %v651
        %v674 = vunpack.c.l.b16 %v622
        %v675 = vunpack.c.l.b16 %v623
        %v676 = vunpack.c.l.b16 %v624
        %v677 = vunpack.c.l.b16 %v625
        %v678 = vunpack.c.l.b16 %v626
        %v679 = vunpack.c.l.b16 %v627
        %v680 = vunpack.c.l.b16 %v628
        %v681 = vunpack.c.l.b16 %v629
        %v682 = vunpack.c.l.b16 %v630
        %v683 = vunpack.c.l.b16 %v631
        %v684 = vunpack.c.l.b16 %v632
        %v685 = vunpack.c.l.b16 %v633
        %v686 = vunpack.c.l.b16 %v634
        %v687 = vunpack.c.l.b16 %v635
        %v688 = vunpack.c.l.b16 %v636
        %v689 = vunpack.c.l.b16 %v637
        %v690 = vpack.c.b16 %v675, %v674
        %v691 = vpack.c.b16 %v677, %v676
        %v692 = vpack.c.b16 %v679, %v678
        %v693 = vpack.c.b16 %v681, %v680
        %v694 = vpack.c.b16 %v683, %v682
        %v695 = vpack.c.b16 %v685, %v684
        %v696 = vpack.c.b16 %v687, %v686
        %v697 = vpack.c.b16 %v689, %v688
        %706 = vmatprep.subr.bf16.mxu0 0
        %707 = vmatpush1.bf16.msra.mxu0 %v697
        %708 = vmatprep.subr.bf16.mxu0 0
        %709 = vmatpush1.bf16.msra.mxu0 %v696
        %710 = vmatprep.subr.bf16.mxu0 0
        %711 = vmatpush1.bf16.msra.mxu0 %v695
        %712 = vmatprep.subr.bf16.mxu0 0
        %713 = vmatpush1.bf16.msra.mxu0 %v694
        %714 = vmatprep.subr.bf16.mxu0 0
        %715 = vmatpush1.bf16.msra.mxu0 %v693
        %716 = vmatprep.subr.bf16.mxu0 0
        %717 = vmatpush1.bf16.msra.mxu0 %v692
        %718 = vmatprep.subr.bf16.mxu0 0
        %719 = vmatpush1.bf16.msra.mxu0 %v691
        %720 = vmatprep.subr.bf16.mxu0 0
        %721 = vmatpush1.bf16.msra.mxu0 %v690
        %722 = vmatprep.subr.bf16.mxu0 0
        %723 = vmatpush2.bf16.msra.mxu0 0
        %724 = vmatprep.subr.bf16.mxu0 0
        %725 = vmatpush2.bf16.msra.mxu0 0
        %726 = vmatprep.subr.bf16.mxu0 0
        %727 = vmatpush2.bf16.msra.mxu0 0
        %728 = vmatprep.subr.bf16.mxu0 0
        %729 = vmatpush2.bf16.msra.mxu0 0
        %730 = vmatprep.subr.bf16.mxu0 0
        %731 = vmatpush2.bf16.msra.mxu0 0
        %732 = vmatprep.subr.bf16.mxu0 0
        %733 = vmatpush2.bf16.msra.mxu0 0
        %734 = vmatprep.subr.bf16.mxu0 0
        %735 = vmatpush2.bf16.msra.mxu0 0
        %736 = vmatprep.subr.bf16.mxu0 0
        %737 = vmatpush2.bf16.msra.mxu0 0
        %738 = vmatprep.mubr.bf16.mxu0 0
        %739 = vmatmul.mubr.bf16.gmra.mxu0 %v644
        %v740 = vpop.f32.mrf.mxu0
        %v741 = vadd.f32 0.0, %v740
        %v742 = vpop.f32.mrf.mxu0
        %v743 = vpop.f32.mrf.mxu0
        %v744 = vadd.f32 0.0, %v743
        %v745 = vpop.f32.mrf.mxu0
        %746 = vmatprep.mubr.bf16.mxu0 0
        %747 = vmatmul.mubr.bf16.gmra.mxu0 %v646
        %v748 = vpop.f32.mrf.mxu0
        %v749 = vadd.f32 0.0, %v748
        %v750 = vpop.f32.mrf.mxu0
        %v751 = vpop.f32.mrf.mxu0
        %v752 = vadd.f32 0.0, %v751
        %v753 = vpop.f32.mrf.mxu0
        %754 = vmatprep.mubr.bf16.mxu0 0
        %755 = vmatmul.mubr.bf16.gmra.mxu0 %v648
        %v756 = vpop.f32.mrf.mxu0
        %v757 = vadd.f32 0.0, %v756
        %v758 = vpop.f32.mrf.mxu0
        %v759 = vpop.f32.mrf.mxu0
        %v760 = vadd.f32 0.0, %v759
        %v761 = vpop.f32.mrf.mxu0
        %762 = vmatprep.mubr.bf16.mxu0 0
        %763 = vmatmul.mubr.bf16.gmra.mxu0 %v650
        %v764 = vpop.f32.mrf.mxu0
        %v765 = vadd.f32 0.0, %v764
        %v766 = vpop.f32.mrf.mxu0
        %v767 = vpop.f32.mrf.mxu0
        %v768 = vadd.f32 0.0, %v767
        %v769 = vpop.f32.mrf.mxu0
        %770 = vmatprep.mubr.bf16.mxu0 0
        %771 = vmatmul.mubr.bf16.gmra.mxu0 %v652
        %v772 = vpop.f32.mrf.mxu0
        %v773 = vadd.f32 0.0, %v772
        %v774 = vpop.f32.mrf.mxu0
        %v775 = vpop.f32.mrf.mxu0
        %v776 = vadd.f32 0.0, %v775
        %v777 = vpop.f32.mrf.mxu0
        %778 = vdwg.mxu0
        %v779 = vadd.f32 %v583, %v741
        %v780 = vadd.f32 %v586, %v744
        %v781 = vadd.f32 %v591, %v749
        %v782 = vadd.f32 %v594, %v752
        %v783 = vadd.f32 %v599, %v757
        %v784 = vadd.f32 %v602, %v760
        %v785 = vadd.f32 %v607, %v765
        %v786 = vadd.f32 %v610, %v768
        %v787 = vadd.f32 %v615, %v773
        %v788 = vadd.f32 %v618, %v776
        %v789 = vld [vmem:[%s219 + $0x8] sm:$0xf]
        %v790 = vld [vmem:[%s219 + $0xc] sm:$0xf]
        %v791 = vld [vmem:[%s219 + $0x10] sm:$0xf]
        %v792 = vld [vmem:[%s219 + $0x14] sm:$0xf]
        %v793 = vld [vmem:[%s219 + $0x18] sm:$0xf]
        %v794 = vld [vmem:[%s219 + $0x1c] sm:$0xf]
        %v795 = vld [vmem:[%s219 + $0x20] sm:$0xf]
        %v796 = vld [vmem:[%s219 + $0x24] sm:$0xf]
        %v797 = vld [vmem:[%s219 + $0x28] sm:$0xf]
        %v798 = vld [vmem:[%s219 + $0x2c] sm:$0xf]
        %v799 = vld [vmem:[#allocation5 + $0xc0] sm:$0xf]
        %v800 = vld [vmem:[#allocation5 + $0xc4] sm:$0xf]
        %v801 = vld [vmem:[#allocation5 + $0xc8] sm:$0xf]
        %v802 = vld [vmem:[#allocation5 + $0xcc] sm:$0xf]
        %v803 = vld [vmem:[#allocation5 + $0xd0] sm:$0xf]
        %v804 = vld [vmem:[#allocation5 + $0xd4] sm:$0xf]
        %v805 = vld [vmem:[#allocation5 + $0xd8] sm:$0xf]
        %v806 = vld [vmem:[#allocation5 + $0xdc] sm:$0xf]
        %v807 = vld [vmem:[#allocation5 + $0xe0] sm:$0xf]
        %v808 = vld [vmem:[#allocation5 + $0xe4] sm:$0xf]
        %v809 = vld [vmem:[#allocation5 + $0xe8] sm:$0xf]
        %v810 = vld [vmem:[#allocation5 + $0xec] sm:$0xf]
        %v811 = vld [vmem:[#allocation5 + $0xf0] sm:$0xf]
        %v812 = vld [vmem:[#allocation5 + $0xf4] sm:$0xf]
        %v813 = vld [vmem:[#allocation5 + $0xf8] sm:$0xf]
        %v814 = vld [vmem:[#allocation5 + $0xfc] sm:$0xf]
        %v825 = vunpack.c.l.b16 %v789
        %v826 = vunpack.c.l.b16 %v790
        %v827 = vunpack.c.l.b16 %v791
        %v828 = vunpack.c.l.b16 %v792
        %v829 = vunpack.c.l.b16 %v793
        %v830 = vunpack.c.l.b16 %v794
        %v831 = vunpack.c.l.b16 %v795
        %v832 = vunpack.c.l.b16 %v796
        %v833 = vunpack.c.l.b16 %v797
        %v834 = vunpack.c.l.b16 %v798
        %v835 = vpack.c.b16 %v826, %v825
        %v836 = vpack.c.b16 %v828, %v827
        %v837 = vpack.c.b16 %v830, %v829
        %v838 = vpack.c.b16 %v832, %v831
        %v839 = vpack.c.b16 %v834, %v833
        %v861 = vunpack.c.l.b16 %v799
        %v862 = vunpack.c.l.b16 %v800
        %v863 = vunpack.c.l.b16 %v801
        %v864 = vunpack.c.l.b16 %v802
        %v865 = vunpack.c.l.b16 %v803
        %v866 = vunpack.c.l.b16 %v804
        %v867 = vunpack.c.l.b16 %v805
        %v868 = vunpack.c.l.b16 %v806
        %v869 = vunpack.c.l.b16 %v807
        %v870 = vunpack.c.l.b16 %v808
        %v871 = vunpack.c.l.b16 %v809
        %v872 = vunpack.c.l.b16 %v810
        %v873 = vunpack.c.l.b16 %v811
        %v874 = vunpack.c.l.b16 %v812
        %v875 = vunpack.c.l.b16 %v813
        %v876 = vunpack.c.l.b16 %v814
        %v877 = vpack.c.b16 %v862, %v861
        %v878 = vpack.c.b16 %v864, %v863
        %v879 = vpack.c.b16 %v866, %v865
        %v880 = vpack.c.b16 %v868, %v867
        %v881 = vpack.c.b16 %v870, %v869
        %v882 = vpack.c.b16 %v872, %v871
        %v883 = vpack.c.b16 %v874, %v873
        %v884 = vpack.c.b16 %v876, %v875
        %893 = vmatprep.subr.bf16.mxu0 0
        %894 = vmatpush1.bf16.msra.mxu0 %v884
        %895 = vmatprep.subr.bf16.mxu0 0
        %896 = vmatpush1.bf16.msra.mxu0 %v883
        %897 = vmatprep.subr.bf16.mxu0 0
        %898 = vmatpush1.bf16.msra.mxu0 %v882
        %899 = vmatprep.subr.bf16.mxu0 0
        %900 = vmatpush1.bf16.msra.mxu0 %v881
        %901 = vmatprep.subr.bf16.mxu0 0
        %902 = vmatpush1.bf16.msra.mxu0 %v880
        %903 = vmatprep.subr.bf16.mxu0 0
        %904 = vmatpush1.bf16.msra.mxu0 %v879
        %905 = vmatprep.subr.bf16.mxu0 0
        %906 = vmatpush1.bf16.msra.mxu0 %v878
        %907 = vmatprep.subr.bf16.mxu0 0
        %908 = vmatpush1.bf16.msra.mxu0 %v877
        %909 = vmatprep.subr.bf16.mxu0 0
        %910 = vmatpush2.bf16.msra.mxu0 0
        %911 = vmatprep.subr.bf16.mxu0 0
        %912 = vmatpush2.bf16.msra.mxu0 0
        %913 = vmatprep.subr.bf16.mxu0 0
        %914 = vmatpush2.bf16.msra.mxu0 0
        %915 = vmatprep.subr.bf16.mxu0 0
        %916 = vmatpush2.bf16.msra.mxu0 0
        %917 = vmatprep.subr.bf16.mxu0 0
        %918 = vmatpush2.bf16.msra.mxu0 0
        %919 = vmatprep.subr.bf16.mxu0 0
        %920 = vmatpush2.bf16.msra.mxu0 0
        %921 = vmatprep.subr.bf16.mxu0 0
        %922 = vmatpush2.bf16.msra.mxu0 0
        %923 = vmatprep.subr.bf16.mxu0 0
        %924 = vmatpush2.bf16.msra.mxu0 0
        %925 = vmatprep.mubr.bf16.mxu0 0
        %926 = vmatmul.mubr.bf16.gmra.mxu0 %v835
        %v927 = vpop.f32.mrf.mxu0
        %v928 = vadd.f32 0.0, %v927
        %v929 = vpop.f32.mrf.mxu0
        %v930 = vpop.f32.mrf.mxu0
        %v931 = vadd.f32 0.0, %v930
        %v932 = vpop.f32.mrf.mxu0
        %933 = vmatprep.mubr.bf16.mxu0 0
        %934 = vmatmul.mubr.bf16.gmra.mxu0 %v836
        %v935 = vpop.f32.mrf.mxu0
        %v936 = vadd.f32 0.0, %v935
        %v937 = vpop.f32.mrf.mxu0
        %v938 = vpop.f32.mrf.mxu0
        %v939 = vadd.f32 0.0, %v938
        %v940 = vpop.f32.mrf.mxu0
        %941 = vmatprep.mubr.bf16.mxu0 0
        %942 = vmatmul.mubr.bf16.gmra.mxu0 %v837
        %v943 = vpop.f32.mrf.mxu0
        %v944 = vadd.f32 0.0, %v943
        %v945 = vpop.f32.mrf.mxu0
        %v946 = vpop.f32.mrf.mxu0
        %v947 = vadd.f32 0.0, %v946
        %v948 = vpop.f32.mrf.mxu0
        %949 = vmatprep.mubr.bf16.mxu0 0
        %950 = vmatmul.mubr.bf16.gmra.mxu0 %v838
        %v951 = vpop.f32.mrf.mxu0
        %v952 = vadd.f32 0.0, %v951
        %v953 = vpop.f32.mrf.mxu0
        %v954 = vpop.f32.mrf.mxu0
        %v955 = vadd.f32 0.0, %v954
        %v956 = vpop.f32.mrf.mxu0
        %957 = vmatprep.mubr.bf16.mxu0 0
        %958 = vmatmul.mubr.bf16.gmra.mxu0 %v839
        %v959 = vpop.f32.mrf.mxu0
        %v960 = vadd.f32 0.0, %v959
        %v961 = vpop.f32.mrf.mxu0
        %v962 = vpop.f32.mrf.mxu0
        %v963 = vadd.f32 0.0, %v962
        %v964 = vpop.f32.mrf.mxu0
        %965 = vdwg.mxu0
        %v966 = vadd.f32 %v779, %v928
        %v967 = vadd.f32 %v780, %v931
        %v968 = vadd.f32 %v781, %v936
        %v969 = vadd.f32 %v782, %v939
        %v970 = vadd.f32 %v783, %v944
        %v971 = vadd.f32 %v784, %v947
        %v972 = vadd.f32 %v785, %v952
        %v973 = vadd.f32 %v786, %v955
        %v974 = vadd.f32 %v787, %v960
        %v975 = vadd.f32 %v788, %v963
        %v976 = vld [vmem:[%s219 + $0x8] sm:$0xf]
        %v977 = vld [vmem:[%s219 + $0xc] sm:$0xf]
        %v978 = vld [vmem:[%s219 + $0x10] sm:$0xf]
        %v979 = vld [vmem:[%s219 + $0x14] sm:$0xf]
        %v980 = vld [vmem:[%s219 + $0x18] sm:$0xf]
        %v981 = vld [vmem:[%s219 + $0x1c] sm:$0xf]
        %v982 = vld [vmem:[%s219 + $0x20] sm:$0xf]
        %v983 = vld [vmem:[%s219 + $0x24] sm:$0xf]
        %v984 = vld [vmem:[%s219 + $0x28] sm:$0xf]
        %v985 = vld [vmem:[%s219 + $0x2c] sm:$0xf]
        %v986 = vld [vmem:[%s219 + $0x30] sm:$0x1]
        %v987 = vld [vmem:[#allocation5 + $0x100] sm:$0xf]
        %v988 = vld [vmem:[#allocation5 + $0x104] sm:$0xf]
        %v989 = vld [vmem:[#allocation5 + $0x108] sm:$0xf]
        %v990 = vld [vmem:[#allocation5 + $0x10c] sm:$0xf]
        %v991 = vld [vmem:[#allocation5 + $0x110] sm:$0xf]
        %v992 = vld [vmem:[#allocation5 + $0x114] sm:$0xf]
        %v993 = vld [vmem:[#allocation5 + $0x118] sm:$0xf]
        %v994 = vld [vmem:[#allocation5 + $0x11c] sm:$0xf]
        %v995 = vld [vmem:[#allocation5 + $0x120] sm:$0xf]
        %v996 = vld [vmem:[#allocation5 + $0x124] sm:$0xf]
        %v997 = vld [vmem:[#allocation5 + $0x128] sm:$0xf]
        %v998 = vld [vmem:[#allocation5 + $0x12c] sm:$0xf]
        %v999 = vld [vmem:[#allocation5 + $0x130] sm:$0xf]
        %v1000 = vld [vmem:[#allocation5 + $0x134] sm:$0xf]
        %v1001 = vld [vmem:[#allocation5 + $0x138] sm:$0xf]
        %v1002 = vld [vmem:[#allocation5 + $0x13c] sm:$0xf]
        %v1014 = vunpack.c.l.b16 %v976
        %v1015 = vunpack.c.l.b16 %v977
        %v1016 = vunpack.c.l.b16 %v978
        %v1017 = vunpack.c.l.b16 %v979
        %v1018 = vunpack.c.l.b16 %v980
        %v1019 = vunpack.c.l.b16 %v981
        %v1020 = vunpack.c.l.b16 %v982
        %v1021 = vunpack.c.l.b16 %v983
        %v1022 = vunpack.c.l.b16 %v984
        %v1023 = vunpack.c.l.b16 %v985
        %v1024 = vunpack.c.l.b16 %v986
        %v1025 = vpack.c.b16 %v1015, %v1014
        %v1026 = vpack.c.b16 %v1017, %v1016
        %v1027 = vpack.c.b16 %v1019, %v1018
        %v1028 = vpack.c.b16 %v1021, %v1020
        %v1029 = vpack.c.b16 %v1023, %v1022
        %v1030 = vpack.c.b16 %v1024, %v1024
        %v1032 = vshrl.u32 %v1025, 16
        %v1034 = vshll.u32 %v1025, 16
        %v1036 = vrot.slane %v1034, 1
        %v1037 = vor.u32 %v1032, %v1036
        %v1039 = vshll.u32 %v1026, 16
        %v1041 = vrot.slane %v1039, 1
        %v1042 = vsel %vm324, %v1037, %v1041
        %v1043 = vshrl.u32 %v1026, 16
        %v1045 = vor.u32 %v1043, %v1041
        %v1047 = vshll.u32 %v1027, 16
        %v1049 = vrot.slane %v1047, 1
        %v1050 = vsel %vm324, %v1045, %v1049
        %v1051 = vshrl.u32 %v1027, 16
        %v1053 = vor.u32 %v1051, %v1049
        %v1055 = vshll.u32 %v1028, 16
        %v1057 = vrot.slane %v1055, 1
        %v1058 = vsel %vm324, %v1053, %v1057
        %v1059 = vshrl.u32 %v1028, 16
        %v1061 = vor.u32 %v1059, %v1057
        %v1063 = vshll.u32 %v1029, 16
        %v1065 = vrot.slane %v1063, 1
        %v1066 = vsel %vm324, %v1061, %v1065
        %v1067 = vshrl.u32 %v1029, 16
        %v1069 = vor.u32 %v1067, %v1065
        %v1071 = vshll.u32 %v1030, 16
        %v1073 = vrot.slane %v1071, 1
        %v1074 = vsel %vm324, %v1069, %v1073
        %v1096 = vunpack.c.l.b16 %v987
        %v1097 = vunpack.c.l.b16 %v988
        %v1098 = vunpack.c.l.b16 %v989
        %v1099 = vunpack.c.l.b16 %v990
        %v1100 = vunpack.c.l.b16 %v991
        %v1101 = vunpack.c.l.b16 %v992
        %v1102 = vunpack.c.l.b16 %v993
        %v1103 = vunpack.c.l.b16 %v994
        %v1104 = vunpack.c.l.b16 %v995
        %v1105 = vunpack.c.l.b16 %v996
        %v1106 = vunpack.c.l.b16 %v997
        %v1107 = vunpack.c.l.b16 %v998
        %v1108 = vunpack.c.l.b16 %v999
        %v1109 = vunpack.c.l.b16 %v1000
        %v1110 = vunpack.c.l.b16 %v1001
        %v1111 = vunpack.c.l.b16 %v1002
        %v1112 = vpack.c.b16 %v1097, %v1096
        %v1113 = vpack.c.b16 %v1099, %v1098
        %v1114 = vpack.c.b16 %v1101, %v1100
        %v1115 = vpack.c.b16 %v1103, %v1102
        %v1116 = vpack.c.b16 %v1105, %v1104
        %v1117 = vpack.c.b16 %v1107, %v1106
        %v1118 = vpack.c.b16 %v1109, %v1108
        %v1119 = vpack.c.b16 %v1111, %v1110
        %1128 = vmatprep.subr.bf16.mxu0 0
        %1129 = vmatpush1.bf16.msra.mxu0 %v1119
        %1130 = vmatprep.subr.bf16.mxu0 0
        %1131 = vmatpush1.bf16.msra.mxu0 %v1118
        %1132 = vmatprep.subr.bf16.mxu0 0
        %1133 = vmatpush1.bf16.msra.mxu0 %v1117
        %1134 = vmatprep.subr.bf16.mxu0 0
        %1135 = vmatpush1.bf16.msra.mxu0 %v1116
        %1136 = vmatprep.subr.bf16.mxu0 0
        %1137 = vmatpush1.bf16.msra.mxu0 %v1115
        %1138 = vmatprep.subr.bf16.mxu0 0
        %1139 = vmatpush1.bf16.msra.mxu0 %v1114
        %1140 = vmatprep.subr.bf16.mxu0 0
        %1141 = vmatpush1.bf16.msra.mxu0 %v1113
        %1142 = vmatprep.subr.bf16.mxu0 0
        %1143 = vmatpush1.bf16.msra.mxu0 %v1112
        %1144 = vmatprep.subr.bf16.mxu0 0
        %1145 = vmatpush2.bf16.msra.mxu0 0
        %1146 = vmatprep.subr.bf16.mxu0 0
        %1147 = vmatpush2.bf16.msra.mxu0 0
        %1148 = vmatprep.subr.bf16.mxu0 0
        %1149 = vmatpush2.bf16.msra.mxu0 0
        %1150 = vmatprep.subr.bf16.mxu0 0
        %1151 = vmatpush2.bf16.msra.mxu0 0
        %1152 = vmatprep.subr.bf16.mxu0 0
        %1153 = vmatpush2.bf16.msra.mxu0 0
        %1154 = vmatprep.subr.bf16.mxu0 0
        %1155 = vmatpush2.bf16.msra.mxu0 0
        %1156 = vmatprep.subr.bf16.mxu0 0
        %1157 = vmatpush2.bf16.msra.mxu0 0
        %1158 = vmatprep.subr.bf16.mxu0 0
        %1159 = vmatpush2.bf16.msra.mxu0 0
        %1160 = vmatprep.mubr.bf16.mxu0 0
        %1161 = vmatmul.mubr.bf16.gmra.mxu0 %v1042
        %v1162 = vpop.f32.mrf.mxu0
        %v1163 = vadd.f32 0.0, %v1162
        %v1164 = vpop.f32.mrf.mxu0
        %v1165 = vpop.f32.mrf.mxu0
        %v1166 = vadd.f32 0.0, %v1165
        %v1167 = vpop.f32.mrf.mxu0
        %1168 = vmatprep.mubr.bf16.mxu0 0
        %1169 = vmatmul.mubr.bf16.gmra.mxu0 %v1050
        %v1170 = vpop.f32.mrf.mxu0
        %v1171 = vadd.f32 0.0, %v1170
        %v1172 = vpop.f32.mrf.mxu0
        %v1173 = vpop.f32.mrf.mxu0
        %v1174 = vadd.f32 0.0, %v1173
        %v1175 = vpop.f32.mrf.mxu0
        %1176 = vmatprep.mubr.bf16.mxu0 0
        %1177 = vmatmul.mubr.bf16.gmra.mxu0 %v1058
        %v1178 = vpop.f32.mrf.mxu0
        %v1179 = vadd.f32 0.0, %v1178
        %v1180 = vpop.f32.mrf.mxu0
        %v1181 = vpop.f32.mrf.mxu0
        %v1182 = vadd.f32 0.0, %v1181
        %v1183 = vpop.f32.mrf.mxu0
        %1184 = vmatprep.mubr.bf16.mxu0 0
        %1185 = vmatmul.mubr.bf16.gmra.mxu0 %v1066
        %v1186 = vpop.f32.mrf.mxu0
        %v1187 = vadd.f32 0.0, %v1186
        %v1188 = vpop.f32.mrf.mxu0
        %v1189 = vpop.f32.mrf.mxu0
        %v1190 = vadd.f32 0.0, %v1189
        %v1191 = vpop.f32.mrf.mxu0
        %1192 = vmatprep.mubr.bf16.mxu0 0
        %1193 = vmatmul.mubr.bf16.gmra.mxu0 %v1074
        %v1194 = vpop.f32.mrf.mxu0
        %v1195 = vadd.f32 0.0, %v1194
        %v1196 = vpop.f32.mrf.mxu0
        %v1197 = vpop.f32.mrf.mxu0
        %v1198 = vadd.f32 0.0, %v1197
        %v1199 = vpop.f32.mrf.mxu0
        %1200 = vdwg.mxu0
        %v1201 = vadd.f32 %v966, %v1163
        %v1202 = vadd.f32 %v967, %v1166
        %v1203 = vadd.f32 %v968, %v1171
        %v1204 = vadd.f32 %v969, %v1174
        %v1205 = vadd.f32 %v970, %v1179
        %v1206 = vadd.f32 %v971, %v1182
        %v1207 = vadd.f32 %v972, %v1187
        %v1208 = vadd.f32 %v973, %v1190
        %v1209 = vadd.f32 %v974, %v1195
        %v1210 = vadd.f32 %v975, %v1198
        %v1211 = vld [vmem:[%s219 + $0x8] sm:$0xe]
        %v1212 = vld [vmem:[#allocation5 + $0x140] sm:$0xf]
        %v1213 = vld [vmem:[#allocation5 + $0x144] sm:$0xf]
        %v1214 = vld [vmem:[#allocation5 + $0x148] sm:$0xf]
        %v1215 = vld [vmem:[#allocation5 + $0x14c] sm:$0xf]
        %v1216 = vld [vmem:[#allocation5 + $0x150] sm:$0xf]
        %v1217 = vld [vmem:[#allocation5 + $0x154] sm:$0xf]
        %v1218 = vld [vmem:[#allocation5 + $0x158] sm:$0xf]
        %v1219 = vld [vmem:[#allocation5 + $0x15c] sm:$0xf]
        %v1220 = vld [vmem:[#allocation5 + $0x160] sm:$0xf]
        %v1221 = vld [vmem:[#allocation5 + $0x164] sm:$0xf]
        %v1222 = vld [vmem:[#allocation5 + $0x168] sm:$0xf]
        %v1223 = vld [vmem:[#allocation5 + $0x16c] sm:$0xf]
        %v1224 = vld [vmem:[#allocation5 + $0x170] sm:$0xf]
        %v1225 = vld [vmem:[#allocation5 + $0x174] sm:$0xf]
        %v1226 = vld [vmem:[#allocation5 + $0x178] sm:$0xf]
        %v1227 = vld [vmem:[#allocation5 + $0x17c] sm:$0xf]
        %v1229 = vunpack.c.l.b16 %v1211
        %v1230 = vpack.c.b16 %v1015, %v1229
        %v1231 = vrot.slane %v1230, 1
        %v1232 = vrot.slane %v1026, 1
        %v1233 = vsel %vm641, %v1231, %v1232
        %v1234 = vrot.slane %v1027, 1
        %v1235 = vsel %vm641, %v1232, %v1234
        %v1236 = vrot.slane %v1028, 1
        %v1237 = vsel %vm641, %v1234, %v1236
        %v1238 = vrot.slane %v1029, 1
        %v1239 = vsel %vm641, %v1236, %v1238
        %v1240 = vrot.slane %v1030, 1
        %v1241 = vsel %vm641, %v1238, %v1240
        %v1263 = vunpack.c.l.b16 %v1212
        %v1264 = vunpack.c.l.b16 %v1213
        %v1265 = vunpack.c.l.b16 %v1214
        %v1266 = vunpack.c.l.b16 %v1215
        %v1267 = vunpack.c.l.b16 %v1216
        %v1268 = vunpack.c.l.b16 %v1217
        %v1269 = vunpack.c.l.b16 %v1218
        %v1270 = vunpack.c.l.b16 %v1219
        %v1271 = vunpack.c.l.b16 %v1220
        %v1272 = vunpack.c.l.b16 %v1221
        %v1273 = vunpack.c.l.b16 %v1222
        %v1274 = vunpack.c.l.b16 %v1223
        %v1275 = vunpack.c.l.b16 %v1224
        %v1276 = vunpack.c.l.b16 %v1225
        %v1277 = vunpack.c.l.b16 %v1226
        %v1278 = vunpack.c.l.b16 %v1227
        %v1279 = vpack.c.b16 %v1264, %v1263
        %v1280 = vpack.c.b16 %v1266, %v1265
        %v1281 = vpack.c.b16 %v1268, %v1267
        %v1282 = vpack.c.b16 %v1270, %v1269
        %v1283 = vpack.c.b16 %v1272, %v1271
        %v1284 = vpack.c.b16 %v1274, %v1273
        %v1285 = vpack.c.b16 %v1276, %v1275
        %v1286 = vpack.c.b16 %v1278, %v1277
        %1295 = vmatprep.subr.bf16.mxu0 0
        %1296 = vmatpush1.bf16.msra.mxu0 %v1286
        %1297 = vmatprep.subr.bf16.mxu0 0
        %1298 = vmatpush1.bf16.msra.mxu0 %v1285
        %1299 = vmatprep.subr.bf16.mxu0 0
        %1300 = vmatpush1.bf16.msra.mxu0 %v1284
        %1301 = vmatprep.subr.bf16.mxu0 0
        %1302 = vmatpush1.bf16.msra.mxu0 %v1283
        %1303 = vmatprep.subr.bf16.mxu0 0
        %1304 = vmatpush1.bf16.msra.mxu0 %v1282
        %1305 = vmatprep.subr.bf16.mxu0 0
        %1306 = vmatpush1.bf16.msra.mxu0 %v1281
        %1307 = vmatprep.subr.bf16.mxu0 0
        %1308 = vmatpush1.bf16.msra.mxu0 %v1280
        %1309 = vmatprep.subr.bf16.mxu0 0
        %1310 = vmatpush1.bf16.msra.mxu0 %v1279
        %1311 = vmatprep.subr.bf16.mxu0 0
        %1312 = vmatpush2.bf16.msra.mxu0 0
        %1313 = vmatprep.subr.bf16.mxu0 0
        %1314 = vmatpush2.bf16.msra.mxu0 0
        %1315 = vmatprep.subr.bf16.mxu0 0
        %1316 = vmatpush2.bf16.msra.mxu0 0
        %1317 = vmatprep.subr.bf16.mxu0 0
        %1318 = vmatpush2.bf16.msra.mxu0 0
        %1319 = vmatprep.subr.bf16.mxu0 0
        %1320 = vmatpush2.bf16.msra.mxu0 0
        %1321 = vmatprep.subr.bf16.mxu0 0
        %1322 = vmatpush2.bf16.msra.mxu0 0
        %1323 = vmatprep.subr.bf16.mxu0 0
        %1324 = vmatpush2.bf16.msra.mxu0 0
        %1325 = vmatprep.subr.bf16.mxu0 0
        %1326 = vmatpush2.bf16.msra.mxu0 0
        %1327 = vmatprep.mubr.bf16.mxu0 0
        %1328 = vmatmul.mubr.bf16.gmra.mxu0 %v1233
        %v1329 = vpop.f32.mrf.mxu0
        %v1330 = vadd.f32 0.0, %v1329
        %v1331 = vpop.f32.mrf.mxu0
        %v1332 = vpop.f32.mrf.mxu0
        %v1333 = vadd.f32 0.0, %v1332
        %v1334 = vpop.f32.mrf.mxu0
        %1335 = vmatprep.mubr.bf16.mxu0 0
        %1336 = vmatmul.mubr.bf16.gmra.mxu0 %v1235
        %v1337 = vpop.f32.mrf.mxu0
        %v1338 = vadd.f32 0.0, %v1337
        %v1339 = vpop.f32.mrf.mxu0
        %v1340 = vpop.f32.mrf.mxu0
        %v1341 = vadd.f32 0.0, %v1340
        %v1342 = vpop.f32.mrf.mxu0
        %1343 = vmatprep.mubr.bf16.mxu0 0
        %1344 = vmatmul.mubr.bf16.gmra.mxu0 %v1237
        %v1345 = vpop.f32.mrf.mxu0
        %v1346 = vadd.f32 0.0, %v1345
        %v1347 = vpop.f32.mrf.mxu0
        %v1348 = vpop.f32.mrf.mxu0
        %v1349 = vadd.f32 0.0, %v1348
        %v1350 = vpop.f32.mrf.mxu0
        %1351 = vmatprep.mubr.bf16.mxu0 0
        %1352 = vmatmul.mubr.bf16.gmra.mxu0 %v1239
        %v1353 = vpop.f32.mrf.mxu0
        %v1354 = vadd.f32 0.0, %v1353
        %v1355 = vpop.f32.mrf.mxu0
        %v1356 = vpop.f32.mrf.mxu0
        %v1357 = vadd.f32 0.0, %v1356
        %v1358 = vpop.f32.mrf.mxu0
        %1359 = vmatprep.mubr.bf16.mxu0 0
        %1360 = vmatmul.mubr.bf16.gmra.mxu0 %v1241
        %v1361 = vpop.f32.mrf.mxu0
        %v1362 = vadd.f32 0.0, %v1361
        %v1363 = vpop.f32.mrf.mxu0
        %v1364 = vpop.f32.mrf.mxu0
        %v1365 = vadd.f32 0.0, %v1364
        %v1366 = vpop.f32.mrf.mxu0
        %1367 = vdwg.mxu0
        %v1368 = vadd.f32 %v1201, %v1330
        %v1369 = vadd.f32 %v1202, %v1333
        %v1370 = vadd.f32 %v1203, %v1338
        %v1371 = vadd.f32 %v1204, %v1341
        %v1372 = vadd.f32 %v1205, %v1346
        %v1373 = vadd.f32 %v1206, %v1349
        %v1374 = vadd.f32 %v1207, %v1354
        %v1375 = vadd.f32 %v1208, %v1357
        %v1376 = vadd.f32 %v1209, %v1362
        %v1377 = vadd.f32 %v1210, %v1365
        %v1378 = vld [vmem:[%s219 + $0x10] sm:$0xf]
        %v1379 = vld [vmem:[%s219 + $0x14] sm:$0xf]
        %v1380 = vld [vmem:[%s219 + $0x18] sm:$0xf]
        %v1381 = vld [vmem:[%s219 + $0x1c] sm:$0xf]
        %v1382 = vld [vmem:[%s219 + $0x20] sm:$0xf]
        %v1383 = vld [vmem:[%s219 + $0x24] sm:$0xf]
        %v1384 = vld [vmem:[%s219 + $0x28] sm:$0xf]
        %v1385 = vld [vmem:[%s219 + $0x2c] sm:$0xf]
        %v1386 = vld [vmem:[%s219 + $0x30] sm:$0xf]
        %v1387 = vld [vmem:[%s219 + $0x34] sm:$0xf]
        %v1388 = vld [vmem:[#allocation5 + $0x180] sm:$0xf]
        %v1389 = vld [vmem:[#allocation5 + $0x184] sm:$0xf]
        %v1390 = vld [vmem:[#allocation5 + $0x188] sm:$0xf]
        %v1391 = vld [vmem:[#allocation5 + $0x18c] sm:$0xf]
        %v1392 = vld [vmem:[#allocation5 + $0x190] sm:$0xf]
        %v1393 = vld [vmem:[#allocation5 + $0x194] sm:$0xf]
        %v1394 = vld [vmem:[#allocation5 + $0x198] sm:$0xf]
        %v1395 = vld [vmem:[#allocation5 + $0x19c] sm:$0xf]
        %v1396 = vld [vmem:[#allocation5 + $0x1a0] sm:$0xf]
        %v1397 = vld [vmem:[#allocation5 + $0x1a4] sm:$0xf]
        %v1398 = vld [vmem:[#allocation5 + $0x1a8] sm:$0xf]
        %v1399 = vld [vmem:[#allocation5 + $0x1ac] sm:$0xf]
        %v1400 = vld [vmem:[#allocation5 + $0x1b0] sm:$0xf]
        %v1401 = vld [vmem:[#allocation5 + $0x1b4] sm:$0xf]
        %v1402 = vld [vmem:[#allocation5 + $0x1b8] sm:$0xf]
        %v1403 = vld [vmem:[#allocation5 + $0x1bc] sm:$0xf]
        %v1414 = vunpack.c.l.b16 %v1378
        %v1415 = vunpack.c.l.b16 %v1379
        %v1416 = vunpack.c.l.b16 %v1380
        %v1417 = vunpack.c.l.b16 %v1381
        %v1418 = vunpack.c.l.b16 %v1382
        %v1419 = vunpack.c.l.b16 %v1383
        %v1420 = vunpack.c.l.b16 %v1384
        %v1421 = vunpack.c.l.b16 %v1385
        %v1422 = vunpack.c.l.b16 %v1386
        %v1423 = vunpack.c.l.b16 %v1387
        %v1424 = vpack.c.b16 %v1415, %v1414
        %v1425 = vpack.c.b16 %v1417, %v1416
        %v1426 = vpack.c.b16 %v1419, %v1418
        %v1427 = vpack.c.b16 %v1421, %v1420
        %v1428 = vpack.c.b16 %v1423, %v1422
        %v1450 = vunpack.c.l.b16 %v1388
        %v1451 = vunpack.c.l.b16 %v1389
        %v1452 = vunpack.c.l.b16 %v1390
        %v1453 = vunpack.c.l.b16 %v1391
        %v1454 = vunpack.c.l.b16 %v1392
        %v1455 = vunpack.c.l.b16 %v1393
        %v1456 = vunpack.c.l.b16 %v1394
        %v1457 = vunpack.c.l.b16 %v1395
        %v1458 = vunpack.c.l.b16 %v1396
        %v1459 = vunpack.c.l.b16 %v1397
        %v1460 = vunpack.c.l.b16 %v1398
        %v1461 = vunpack.c.l.b16 %v1399
        %v1462 = vunpack.c.l.b16 %v1400
        %v1463 = vunpack.c.l.b16 %v1401
        %v1464 = vunpack.c.l.b16 %v1402
        %v1465 = vunpack.c.l.b16 %v1403
        %v1466 = vpack.c.b16 %v1451, %v1450
        %v1467 = vpack.c.b16 %v1453, %v1452
        %v1468 = vpack.c.b16 %v1455, %v1454
        %v1469 = vpack.c.b16 %v1457, %v1456
        %v1470 = vpack.c.b16 %v1459, %v1458
        %v1471 = vpack.c.b16 %v1461, %v1460
        %v1472 = vpack.c.b16 %v1463, %v1462
        %v1473 = vpack.c.b16 %v1465, %v1464
        %1482 = vmatprep.subr.bf16.mxu0 0
        %1483 = vmatpush1.bf16.msra.mxu0 %v1473
        %1484 = vmatprep.subr.bf16.mxu0 0
        %1485 = vmatpush1.bf16.msra.mxu0 %v1472
        %1486 = vmatprep.subr.bf16.mxu0 0
        %1487 = vmatpush1.bf16.msra.mxu0 %v1471
        %1488 = vmatprep.subr.bf16.mxu0 0
        %1489 = vmatpush1.bf16.msra.mxu0 %v1470
        %1490 = vmatprep.subr.bf16.mxu0 0
        %1491 = vmatpush1.bf16.msra.mxu0 %v1469
        %1492 = vmatprep.subr.bf16.mxu0 0
        %1493 = vmatpush1.bf16.msra.mxu0 %v1468
        %1494 = vmatprep.subr.bf16.mxu0 0
        %1495 = vmatpush1.bf16.msra.mxu0 %v1467
        %1496 = vmatprep.subr.bf16.mxu0 0
        %1497 = vmatpush1.bf16.msra.mxu0 %v1466
        %1498 = vmatprep.subr.bf16.mxu0 0
        %1499 = vmatpush2.bf16.msra.mxu0 0
        %1500 = vmatprep.subr.bf16.mxu0 0
        %1501 = vmatpush2.bf16.msra.mxu0 0
        %1502 = vmatprep.subr.bf16.mxu0 0
        %1503 = vmatpush2.bf16.msra.mxu0 0
        %1504 = vmatprep.subr.bf16.mxu0 0
        %1505 = vmatpush2.bf16.msra.mxu0 0
        %1506 = vmatprep.subr.bf16.mxu0 0
        %1507 = vmatpush2.bf16.msra.mxu0 0
        %1508 = vmatprep.subr.bf16.mxu0 0
        %1509 = vmatpush2.bf16.msra.mxu0 0
        %1510 = vmatprep.subr.bf16.mxu0 0
        %1511 = vmatpush2.bf16.msra.mxu0 0
        %1512 = vmatprep.subr.bf16.mxu0 0
        %1513 = vmatpush2.bf16.msra.mxu0 0
        %1514 = vmatprep.mubr.bf16.mxu0 0
        %1515 = vmatmul.mubr.bf16.gmra.mxu0 %v1424
        %v1516 = vpop.f32.mrf.mxu0
        %v1517 = vadd.f32 0.0, %v1516
        %v1518 = vpop.f32.mrf.mxu0
        %v1519 = vpop.f32.mrf.mxu0
        %v1520 = vadd.f32 0.0, %v1519
        %v1521 = vpop.f32.mrf.mxu0
        %1522 = vmatprep.mubr.bf16.mxu0 0
        %1523 = vmatmul.mubr.bf16.gmra.mxu0 %v1425
        %v1524 = vpop.f32.mrf.mxu0
        %v1525 = vadd.f32 0.0, %v1524
        %v1526 = vpop.f32.mrf.mxu0
        %v1527 = vpop.f32.mrf.mxu0
        %v1528 = vadd.f32 0.0, %v1527
        %v1529 = vpop.f32.mrf.mxu0
        %1530 = vmatprep.mubr.bf16.mxu0 0
        %1531 = vmatmul.mubr.bf16.gmra.mxu0 %v1426
        %v1532 = vpop.f32.mrf.mxu0
        %v1533 = vadd.f32 0.0, %v1532
        %v1534 = vpop.f32.mrf.mxu0
        %v1535 = vpop.f32.mrf.mxu0
        %v1536 = vadd.f32 0.0, %v1535
        %v1537 = vpop.f32.mrf.mxu0
        %1538 = vmatprep.mubr.bf16.mxu0 0
        %1539 = vmatmul.mubr.bf16.gmra.mxu0 %v1427
        %v1540 = vpop.f32.mrf.mxu0
        %v1541 = vadd.f32 0.0, %v1540
        %v1542 = vpop.f32.mrf.mxu0
        %v1543 = vpop.f32.mrf.mxu0
        %v1544 = vadd.f32 0.0, %v1543
        %v1545 = vpop.f32.mrf.mxu0
        %1546 = vmatprep.mubr.bf16.mxu0 0
        %1547 = vmatmul.mubr.bf16.gmra.mxu0 %v1428
        %v1548 = vpop.f32.mrf.mxu0
        %v1549 = vadd.f32 0.0, %v1548
        %v1550 = vpop.f32.mrf.mxu0
        %v1551 = vpop.f32.mrf.mxu0
        %v1552 = vadd.f32 0.0, %v1551
        %v1553 = vpop.f32.mrf.mxu0
        %1554 = vdwg.mxu0
        %v1555 = vadd.f32 %v1368, %v1517
        %v1556 = vadd.f32 %v1369, %v1520
        %v1557 = vadd.f32 %v1370, %v1525
        %v1558 = vadd.f32 %v1371, %v1528
        %v1559 = vadd.f32 %v1372, %v1533
        %v1560 = vadd.f32 %v1373, %v1536
        %v1561 = vadd.f32 %v1374, %v1541
        %v1562 = vadd.f32 %v1375, %v1544
        %v1563 = vadd.f32 %v1376, %v1549
        %v1564 = vadd.f32 %v1377, %v1552
        %v1565 = vld [vmem:[%s219 + $0x10] sm:$0xf]
        %v1566 = vld [vmem:[%s219 + $0x14] sm:$0xf]
        %v1567 = vld [vmem:[%s219 + $0x18] sm:$0xf]
        %v1568 = vld [vmem:[%s219 + $0x1c] sm:$0xf]
        %v1569 = vld [vmem:[%s219 + $0x20] sm:$0xf]
        %v1570 = vld [vmem:[%s219 + $0x24] sm:$0xf]
        %v1571 = vld [vmem:[%s219 + $0x28] sm:$0xf]
        %v1572 = vld [vmem:[%s219 + $0x2c] sm:$0xf]
        %v1573 = vld [vmem:[%s219 + $0x30] sm:$0xf]
        %v1574 = vld [vmem:[%s219 + $0x34] sm:$0xf]
        %v1575 = vld [vmem:[%s219 + $0x38] sm:$0x1]
        %v1576 = vld [vmem:[#allocation5 + $0x1c0] sm:$0xf]
        %v1577 = vld [vmem:[#allocation5 + $0x1c4] sm:$0xf]
        %v1578 = vld [vmem:[#allocation5 + $0x1c8] sm:$0xf]
        %v1579 = vld [vmem:[#allocation5 + $0x1cc] sm:$0xf]
        %v1580 = vld [vmem:[#allocation5 + $0x1d0] sm:$0xf]
        %v1581 = vld [vmem:[#allocation5 + $0x1d4] sm:$0xf]
        %v1582 = vld [vmem:[#allocation5 + $0x1d8] sm:$0xf]
        %v1583 = vld [vmem:[#allocation5 + $0x1dc] sm:$0xf]
        %v1584 = vld [vmem:[#allocation5 + $0x1e0] sm:$0xf]
        %v1585 = vld [vmem:[#allocation5 + $0x1e4] sm:$0xf]
        %v1586 = vld [vmem:[#allocation5 + $0x1e8] sm:$0xf]
        %v1587 = vld [vmem:[#allocation5 + $0x1ec] sm:$0xf]
        %v1588 = vld [vmem:[#allocation5 + $0x1f0] sm:$0xf]
        %v1589 = vld [vmem:[#allocation5 + $0x1f4] sm:$0xf]
        %v1590 = vld [vmem:[#allocation5 + $0x1f8] sm:$0xf]
        %v1591 = vld [vmem:[#allocation5 + $0x1fc] sm:$0xf]
        %v1603 = vunpack.c.l.b16 %v1565
        %v1604 = vunpack.c.l.b16 %v1566
        %v1605 = vunpack.c.l.b16 %v1567
        %v1606 = vunpack.c.l.b16 %v1568
        %v1607 = vunpack.c.l.b16 %v1569
        %v1608 = vunpack.c.l.b16 %v1570
        %v1609 = vunpack.c.l.b16 %v1571
        %v1610 = vunpack.c.l.b16 %v1572
        %v1611 = vunpack.c.l.b16 %v1573
        %v1612 = vunpack.c.l.b16 %v1574
        %v1613 = vunpack.c.l.b16 %v1575
        %v1614 = vpack.c.b16 %v1604, %v1603
        %v1615 = vpack.c.b16 %v1606, %v1605
        %v1616 = vpack.c.b16 %v1608, %v1607
        %v1617 = vpack.c.b16 %v1610, %v1609
        %v1618 = vpack.c.b16 %v1612, %v1611
        %v1619 = vpack.c.b16 %v1613, %v1613
        %v1621 = vshrl.u32 %v1614, 16
        %v1623 = vshll.u32 %v1614, 16
        %v1625 = vrot.slane %v1623, 1
        %v1626 = vor.u32 %v1621, %v1625
        %v1628 = vshll.u32 %v1615, 16
        %v1630 = vrot.slane %v1628, 1
        %v1631 = vsel %vm324, %v1626, %v1630
        %v1632 = vshrl.u32 %v1615, 16
        %v1634 = vor.u32 %v1632, %v1630
        %v1636 = vshll.u32 %v1616, 16
        %v1638 = vrot.slane %v1636, 1
        %v1639 = vsel %vm324, %v1634, %v1638
        %v1640 = vshrl.u32 %v1616, 16
        %v1642 = vor.u32 %v1640, %v1638
        %v1644 = vshll.u32 %v1617, 16
        %v1646 = vrot.slane %v1644, 1
        %v1647 = vsel %vm324, %v1642, %v1646
        %v1648 = vshrl.u32 %v1617, 16
        %v1650 = vor.u32 %v1648, %v1646
        %v1652 = vshll.u32 %v1618, 16
        %v1654 = vrot.slane %v1652, 1
        %v1655 = vsel %vm324, %v1650, %v1654
        %v1656 = vshrl.u32 %v1618, 16
        %v1658 = vor.u32 %v1656, %v1654
        %v1660 = vshll.u32 %v1619, 16
        %v1662 = vrot.slane %v1660, 1
        %v1663 = vsel %vm324, %v1658, %v1662
        %v1685 = vunpack.c.l.b16 %v1576
        %v1686 = vunpack.c.l.b16 %v1577
        %v1687 = vunpack.c.l.b16 %v1578
        %v1688 = vunpack.c.l.b16 %v1579
        %v1689 = vunpack.c.l.b16 %v1580
        %v1690 = vunpack.c.l.b16 %v1581
        %v1691 = vunpack.c.l.b16 %v1582
        %v1692 = vunpack.c.l.b16 %v1583
        %v1693 = vunpack.c.l.b16 %v1584
        %v1694 = vunpack.c.l.b16 %v1585
        %v1695 = vunpack.c.l.b16 %v1586
        %v1696 = vunpack.c.l.b16 %v1587
        %v1697 = vunpack.c.l.b16 %v1588
        %v1698 = vunpack.c.l.b16 %v1589
        %v1699 = vunpack.c.l.b16 %v1590
        %v1700 = vunpack.c.l.b16 %v1591
        %v1701 = vpack.c.b16 %v1686, %v1685
        %v1702 = vpack.c.b16 %v1688, %v1687
        %v1703 = vpack.c.b16 %v1690, %v1689
        %v1704 = vpack.c.b16 %v1692, %v1691
        %v1705 = vpack.c.b16 %v1694, %v1693
        %v1706 = vpack.c.b16 %v1696, %v1695
        %v1707 = vpack.c.b16 %v1698, %v1697
        %v1708 = vpack.c.b16 %v1700, %v1699
        %1717 = vmatprep.subr.bf16.mxu0 0
        %1718 = vmatpush1.bf16.msra.mxu0 %v1708
        %1719 = vmatprep.subr.bf16.mxu0 0
        %1720 = vmatpush1.bf16.msra.mxu0 %v1707
        %1721 = vmatprep.subr.bf16.mxu0 0
        %1722 = vmatpush1.bf16.msra.mxu0 %v1706
        %1723 = vmatprep.subr.bf16.mxu0 0
        %1724 = vmatpush1.bf16.msra.mxu0 %v1705
        %1725 = vmatprep.subr.bf16.mxu0 0
        %1726 = vmatpush1.bf16.msra.mxu0 %v1704
        %1727 = vmatprep.subr.bf16.mxu0 0
        %1728 = vmatpush1.bf16.msra.mxu0 %v1703
        %1729 = vmatprep.subr.bf16.mxu0 0
        %1730 = vmatpush1.bf16.msra.mxu0 %v1702
        %1731 = vmatprep.subr.bf16.mxu0 0
        %1732 = vmatpush1.bf16.msra.mxu0 %v1701
        %1733 = vmatprep.subr.bf16.mxu0 0
        %1734 = vmatpush2.bf16.msra.mxu0 0
        %1735 = vmatprep.subr.bf16.mxu0 0
        %1736 = vmatpush2.bf16.msra.mxu0 0
        %1737 = vmatprep.subr.bf16.mxu0 0
        %1738 = vmatpush2.bf16.msra.mxu0 0
        %1739 = vmatprep.subr.bf16.mxu0 0
        %1740 = vmatpush2.bf16.msra.mxu0 0
        %1741 = vmatprep.subr.bf16.mxu0 0
        %1742 = vmatpush2.bf16.msra.mxu0 0
        %1743 = vmatprep.subr.bf16.mxu0 0
        %1744 = vmatpush2.bf16.msra.mxu0 0
        %1745 = vmatprep.subr.bf16.mxu0 0
        %1746 = vmatpush2.bf16.msra.mxu0 0
        %1747 = vmatprep.subr.bf16.mxu0 0
        %1748 = vmatpush2.bf16.msra.mxu0 0
        %1749 = vmatprep.mubr.bf16.mxu0 0
        %1750 = vmatmul.mubr.bf16.gmra.mxu0 %v1631
        %v1751 = vpop.f32.mrf.mxu0
        %v1752 = vadd.f32 0.0, %v1751
        %v1753 = vpop.f32.mrf.mxu0
        %v1754 = vpop.f32.mrf.mxu0
        %v1755 = vadd.f32 0.0, %v1754
        %v1756 = vpop.f32.mrf.mxu0
        %1757 = vmatprep.mubr.bf16.mxu0 0
        %1758 = vmatmul.mubr.bf16.gmra.mxu0 %v1639
        %v1759 = vpop.f32.mrf.mxu0
        %v1760 = vadd.f32 0.0, %v1759
        %v1761 = vpop.f32.mrf.mxu0
        %v1762 = vpop.f32.mrf.mxu0
        %v1763 = vadd.f32 0.0, %v1762
        %v1764 = vpop.f32.mrf.mxu0
        %1765 = vmatprep.mubr.bf16.mxu0 0
        %1766 = vmatmul.mubr.bf16.gmra.mxu0 %v1647
        %v1767 = vpop.f32.mrf.mxu0
        %v1768 = vadd.f32 0.0, %v1767
        %v1769 = vpop.f32.mrf.mxu0
        %v1770 = vpop.f32.mrf.mxu0
        %v1771 = vadd.f32 0.0, %v1770
        %v1772 = vpop.f32.mrf.mxu0
        %1773 = vmatprep.mubr.bf16.mxu0 0
        %1774 = vmatmul.mubr.bf16.gmra.mxu0 %v1655
        %v1775 = vpop.f32.mrf.mxu0
        %v1776 = vadd.f32 0.0, %v1775
        %v1777 = vpop.f32.mrf.mxu0
        %v1778 = vpop.f32.mrf.mxu0
        %v1779 = vadd.f32 0.0, %v1778
        %v1780 = vpop.f32.mrf.mxu0
        %1781 = vmatprep.mubr.bf16.mxu0 0
        %1782 = vmatmul.mubr.bf16.gmra.mxu0 %v1663
        %v1783 = vpop.f32.mrf.mxu0
        %v1784 = vadd.f32 0.0, %v1783
        %v1785 = vpop.f32.mrf.mxu0
        %v1786 = vpop.f32.mrf.mxu0
        %v1787 = vadd.f32 0.0, %v1786
        %v1788 = vpop.f32.mrf.mxu0
        %1789 = vdwg.mxu0
        %v1790 = vadd.f32 %v1555, %v1752
        %v1791 = vadd.f32 %v1556, %v1755
        %v1792 = vadd.f32 %v1557, %v1760
        %v1793 = vadd.f32 %v1558, %v1763
        %v1794 = vadd.f32 %v1559, %v1768
        %v1795 = vadd.f32 %v1560, %v1771
        %v1796 = vadd.f32 %v1561, %v1776
        %v1797 = vadd.f32 %v1562, %v1779
        %v1798 = vadd.f32 %v1563, %v1784
        %v1799 = vadd.f32 %v1564, %v1787
        %v1800 = vld [vmem:[%s219 + $0x10] sm:$0xe]
        %v1801 = vld [vmem:[#allocation5 + $0x200] sm:$0xf]
        %v1802 = vld [vmem:[#allocation5 + $0x204] sm:$0xf]
        %v1803 = vld [vmem:[#allocation5 + $0x208] sm:$0xf]
        %v1804 = vld [vmem:[#allocation5 + $0x20c] sm:$0xf]
        %v1805 = vld [vmem:[#allocation5 + $0x210] sm:$0xf]
        %v1806 = vld [vmem:[#allocation5 + $0x214] sm:$0xf]
        %v1807 = vld [vmem:[#allocation5 + $0x218] sm:$0xf]
        %v1808 = vld [vmem:[#allocation5 + $0x21c] sm:$0xf]
        %v1809 = vld [vmem:[#allocation5 + $0x220] sm:$0xf]
        %v1810 = vld [vmem:[#allocation5 + $0x224] sm:$0xf]
        %v1811 = vld [vmem:[#allocation5 + $0x228] sm:$0xf]
        %v1812 = vld [vmem:[#allocation5 + $0x22c] sm:$0xf]
        %v1813 = vld [vmem:[#allocation5 + $0x230] sm:$0xf]
        %v1814 = vld [vmem:[#allocation5 + $0x234] sm:$0xf]
        %v1815 = vld [vmem:[#allocation5 + $0x238] sm:$0xf]
        %v1816 = vld [vmem:[#allocation5 + $0x23c] sm:$0xf]
        %v1818 = vunpack.c.l.b16 %v1800
        %v1819 = vpack.c.b16 %v1604, %v1818
        %v1820 = vrot.slane %v1819, 1
        %v1821 = vrot.slane %v1615, 1
        %v1822 = vsel %vm641, %v1820, %v1821
        %v1823 = vrot.slane %v1616, 1
        %v1824 = vsel %vm641, %v1821, %v1823
        %v1825 = vrot.slane %v1617, 1
        %v1826 = vsel %vm641, %v1823, %v1825
        %v1827 = vrot.slane %v1618, 1
        %v1828 = vsel %vm641, %v1825, %v1827
        %v1829 = vrot.slane %v1619, 1
        %v1830 = vsel %vm641, %v1827, %v1829
        %v1852 = vunpack.c.l.b16 %v1801
        %v1853 = vunpack.c.l.b16 %v1802
        %v1854 = vunpack.c.l.b16 %v1803
        %v1855 = vunpack.c.l.b16 %v1804
        %v1856 = vunpack.c.l.b16 %v1805
        %v1857 = vunpack.c.l.b16 %v1806
        %v1858 = vunpack.c.l.b16 %v1807
        %v1859 = vunpack.c.l.b16 %v1808
        %v1860 = vunpack.c.l.b16 %v1809
        %v1861 = vunpack.c.l.b16 %v1810
        %v1862 = vunpack.c.l.b16 %v1811
        %v1863 = vunpack.c.l.b16 %v1812
        %v1864 = vunpack.c.l.b16 %v1813
        %v1865 = vunpack.c.l.b16 %v1814
        %v1866 = vunpack.c.l.b16 %v1815
        %v1867 = vunpack.c.l.b16 %v1816
        %v1868 = vpack.c.b16 %v1853, %v1852
        %v1869 = vpack.c.b16 %v1855, %v1854
        %v1870 = vpack.c.b16 %v1857, %v1856
        %v1871 = vpack.c.b16 %v1859, %v1858
        %v1872 = vpack.c.b16 %v1861, %v1860
        %v1873 = vpack.c.b16 %v1863, %v1862
        %v1874 = vpack.c.b16 %v1865, %v1864
        %v1875 = vpack.c.b16 %v1867, %v1866
        %1884 = vmatprep.subr.bf16.mxu0 0
        %1885 = vmatpush1.bf16.msra.mxu0 %v1875
        %1886 = vmatprep.subr.bf16.mxu0 0
        %1887 = vmatpush1.bf16.msra.mxu0 %v1874
        %1888 = vmatprep.subr.bf16.mxu0 0
        %1889 = vmatpush1.bf16.msra.mxu0 %v1873
        %1890 = vmatprep.subr.bf16.mxu0 0
        %1891 = vmatpush1.bf16.msra.mxu0 %v1872
        %1892 = vmatprep.subr.bf16.mxu0 0
        %1893 = vmatpush1.bf16.msra.mxu0 %v1871
        %1894 = vmatprep.subr.bf16.mxu0 0
        %1895 = vmatpush1.bf16.msra.mxu0 %v1870
        %1896 = vmatprep.subr.bf16.mxu0 0
        %1897 = vmatpush1.bf16.msra.mxu0 %v1869
        %1898 = vmatprep.subr.bf16.mxu0 0
        %1899 = vmatpush1.bf16.msra.mxu0 %v1868
        %1900 = vmatprep.subr.bf16.mxu0 0
        %1901 = vmatpush2.bf16.msra.mxu0 0
        %1902 = vmatprep.subr.bf16.mxu0 0
        %1903 = vmatpush2.bf16.msra.mxu0 0
        %1904 = vmatprep.subr.bf16.mxu0 0
        %1905 = vmatpush2.bf16.msra.mxu0 0
        %1906 = vmatprep.subr.bf16.mxu0 0
        %1907 = vmatpush2.bf16.msra.mxu0 0
        %1908 = vmatprep.subr.bf16.mxu0 0
        %1909 = vmatpush2.bf16.msra.mxu0 0
        %1910 = vmatprep.subr.bf16.mxu0 0
        %1911 = vmatpush2.bf16.msra.mxu0 0
        %1912 = vmatprep.subr.bf16.mxu0 0
        %1913 = vmatpush2.bf16.msra.mxu0 0
        %1914 = vmatprep.subr.bf16.mxu0 0
        %1915 = vmatpush2.bf16.msra.mxu0 0
        %1916 = vmatprep.mubr.bf16.mxu0 0
        %1917 = vmatmul.mubr.bf16.gmra.mxu0 %v1822
        %v1918 = vpop.f32.mrf.mxu0
        %v1919 = vadd.f32 0.0, %v1918
        %v1920 = vpop.f32.mrf.mxu0
        %v1921 = vpop.f32.mrf.mxu0
        %v1922 = vadd.f32 0.0, %v1921
        %v1923 = vpop.f32.mrf.mxu0
        %1924 = vmatprep.mubr.bf16.mxu0 0
        %1925 = vmatmul.mubr.bf16.gmra.mxu0 %v1824
        %v1926 = vpop.f32.mrf.mxu0
        %v1927 = vadd.f32 0.0, %v1926
        %v1928 = vpop.f32.mrf.mxu0
        %v1929 = vpop.f32.mrf.mxu0
        %v1930 = vadd.f32 0.0, %v1929
        %v1931 = vpop.f32.mrf.mxu0
        %1932 = vmatprep.mubr.bf16.mxu0 0
        %1933 = vmatmul.mubr.bf16.gmra.mxu0 %v1826
        %v1934 = vpop.f32.mrf.mxu0
        %v1935 = vadd.f32 0.0, %v1934
        %v1936 = vpop.f32.mrf.mxu0
        %v1937 = vpop.f32.mrf.mxu0
        %v1938 = vadd.f32 0.0, %v1937
        %v1939 = vpop.f32.mrf.mxu0
        %1940 = vmatprep.mubr.bf16.mxu0 0
        %1941 = vmatmul.mubr.bf16.gmra.mxu0 %v1828
        %v1942 = vpop.f32.mrf.mxu0
        %v1943 = vadd.f32 0.0, %v1942
        %v1944 = vpop.f32.mrf.mxu0
        %v1945 = vpop.f32.mrf.mxu0
        %v1946 = vadd.f32 0.0, %v1945
        %v1947 = vpop.f32.mrf.mxu0
        %1948 = vmatprep.mubr.bf16.mxu0 0
        %1949 = vmatmul.mubr.bf16.gmra.mxu0 %v1830
        %v1950 = vpop.f32.mrf.mxu0
        %v1951 = vadd.f32 0.0, %v1950
        %v1952 = vpop.f32.mrf.mxu0
        %v1953 = vpop.f32.mrf.mxu0
        %v1954 = vadd.f32 0.0, %v1953
        %v1955 = vpop.f32.mrf.mxu0
        %1956 = vdwg.mxu0
        %v1957 = vadd.f32 %v1790, %v1919
        %v1958 = vadd.f32 %v1791, %v1922
        %v1959 = vadd.f32 %v1792, %v1927
        %v1960 = vadd.f32 %v1793, %v1930
        %v1961 = vadd.f32 %v1794, %v1935
        %v1962 = vadd.f32 %v1795, %v1938
        %v1963 = vadd.f32 %v1796, %v1943
        %v1964 = vadd.f32 %v1797, %v1946
        %v1965 = vadd.f32 %v1798, %v1951
        %v1966 = vadd.f32 %v1799, %v1954
        %v1967 = vld [vmem:[%s251] sm:$0x1]
        %v1969 = vlaneseq
        %v1970 = vshrl.u32 %v1969, 7
        %v1971 = vsub.s32 0, %v1970
        %v1972 = vrot.slane %v1967, %v1971
        %v1974 = vadd.f32 %v1957, %v1972
        %v1975 = vadd.f32 %v1958, %v1972
        %v1976 = vadd.f32 %v1959, %v1972
        %v1977 = vadd.f32 %v1960, %v1972
        %v1978 = vadd.f32 %v1961, %v1972
        %v1979 = vadd.f32 %v1962, %v1972
        %v1980 = vadd.f32 %v1963, %v1972
        %v1981 = vadd.f32 %v1964, %v1972
        %v1982 = vadd.f32 %v1965, %v1972
        %v1983 = vadd.f32 %v1966, %v1972
        %v1984 = vmax.f32 %v1974, 0.0
        %v1985 = vmax.f32 %v1975, 0.0
        %v1986 = vmax.f32 %v1976, 0.0
        %v1987 = vmax.f32 %v1977, 0.0
        %v1988 = vmax.f32 %v1978, 0.0
        %v1989 = vmax.f32 %v1979, 0.0
        %v1990 = vmax.f32 %v1980, 0.0
        %v1991 = vmax.f32 %v1981, 0.0
        %v1992 = vmax.f32 %v1982, 0.0
        %v1993 = vmax.f32 %v1983, 0.0
        %v1994 = vpack.c.bf16 %v1985, %v1984
        %v1995 = vpack.c.bf16 %v1987, %v1986
        %v1996 = vpack.c.bf16 %v1989, %v1988
        %v1997 = vpack.c.bf16 %v1991, %v1990
        %v1998 = vpack.c.bf16 %v1993, %v1992
        %v2004 = vunpack.c.l.b16 %v1994
        %v2005 = vunpack.c.h.b16 %v1994
        %v2006 = vunpack.c.l.b16 %v1995
        %v2007 = vunpack.c.h.b16 %v1995
        %v2008 = vunpack.c.l.b16 %v1996
        %v2009 = vunpack.c.h.b16 %v1996
        %v2010 = vunpack.c.l.b16 %v1997
        %v2011 = vunpack.c.h.b16 %v1997
        %v2012 = vunpack.c.l.b16 %v1998
        %v2013 = vunpack.c.h.b16 %v1998
        %v2014 = vpack.c.b16 %v2004, %v2004
        %v2015 = vpack.c.b16 %v2005, %v2005
        %v2016 = vpack.c.b16 %v2006, %v2006
        %v2017 = vpack.c.b16 %v2007, %v2007
        %v2018 = vpack.c.b16 %v2008, %v2008
        %v2019 = vpack.c.b16 %v2009, %v2009
        %v2020 = vpack.c.b16 %v2010, %v2010
        %v2021 = vpack.c.b16 %v2011, %v2011
        %v2022 = vpack.c.b16 %v2012, %v2012
        %v2023 = vpack.c.b16 %v2013, %v2013
        %2034 = vst [vmem:[%s248] sm:$0xf] %v2014
        %2035 = vst [vmem:[%s248 + $0x4] sm:$0xf] %v2015
        %2036 = vst [vmem:[%s248 + $0x8] sm:$0xf] %v2016
        %2037 = vst [vmem:[%s248 + $0xc] sm:$0xf] %v2017
        %2038 = vst [vmem:[%s248 + $0x10] sm:$0xf] %v2018
        %2039 = vst [vmem:[%s248 + $0x14] sm:$0xf] %v2019
        %2040 = vst [vmem:[%s248 + $0x18] sm:$0xf] %v2020
        %2041 = vst [vmem:[%s248 + $0x1c] sm:$0xf] %v2021
        %2042 = vst [vmem:[%s248 + $0x20] sm:$0xf] %v2022
        %2043 = vst [vmem:[%s248 + $0x24] sm:$0xf] %v2023
        %s2044 = sand.u32 %s132, 1
        %s2045 = scalar_lea.sflag [#allocation4], %s2044
        %s2046 = sand.u32 %s132, 1
        %s2047 = smul.addr %s2046, 40
        %s2048 = scalar_lea.vmem [#allocation7], %s2047
        // Predicated region
        $region41: #{tpu_custom_call.1} parent=31 // pred_check
          %p2049 = pneg %p142
        $region42: #{tpu_custom_call.1} parent=31 // pred_check_branch
          %2051 = sbr.rel (%p2049) target = $region44
        $region43: #{tpu_custom_call.1} parent=31 // pred_region
          %s2053 = ssub.s32 640, 640
          %2054 = vsyncadd %s2045, %s2053
          %s2055 = smul.addr %s28, 10
          %s2056 = sadd.s32 %s27, %s2055
          %s2057 = smul.addr %s26, 20
          %s2058 = sadd.s32 %s2056, %s2057
          %s2059 = smul.addr %s2058, 64
          %s2060 = scalar_lea.hbm %s3, %s2059
          %s2061 = sshll.u32 %s2048, 4
          %s2062 = int_to_ptr.vmem [resolvable:$true] %s2061
          %2067 = dma.vmem_to_hbm [thread:$0]  %s2062, 640, %s2060, %s2045, 64, 64, 4
        $region44: #{tpu_custom_call.1} parent=31 // pred_fallthru
          _
      $region32: #{tpu_custom_call.1} parent=5 // pred_fallthru
        _
      %p2068 = scmp.le.s32.totalorder 2, %s16
      // Predicated region
      $region45: #{tpu_custom_call.1} parent=5 // pred_check
        %p2069 = pneg %p2068
      $region46: #{tpu_custom_call.1} parent=5 // pred_check_branch
        %2071 = sbr.rel (%p2069) target = $region48
      $region47: #{tpu_custom_call.1} parent=5 // pred_region
        %s2072 = ssub.s32 %s16, 2
        // Predicated region
        $region49: #{tpu_custom_call.1} parent=47 // pred_check
          %p2073 = pneg %p148
        $region50: #{tpu_custom_call.1} parent=47 // pred_check_branch
          %2075 = sbr.rel (%p2073) target = $region52
        $region51: #{tpu_custom_call.1} parent=47 // pred_region
          %s2076 = sand.u32 %s133, 1
          %s2077 = scalar_lea.sflag [#allocation4], %s2076
          %s2078 = sand.u32 %s133, 1
          %s2079 = smul.addr %s2078, 40
          %s2080 = scalar_lea.vmem [#allocation7], %s2079
          %2081 = dma.done %s2077, 640
        $region52: #{tpu_custom_call.1} parent=47 // pred_fallthru
          _
      $region48: #{tpu_custom_call.1} parent=5 // pred_fallthru
        _
    $region6: #{tpu_custom_call.1} parent=1 // loop_footer
      %s20 = sadd.s32 1, %s16
    $region7: #{tpu_custom_call.1} parent=1 // loop_footer_branch
      %15 = sbr.rel target = $region3
    $region8: #{tpu_custom_call.1} parent=1 // loop_exit
      _
    %2082 = vsyncpa [#allocation3], 1
    %s2083 = scalar_lea.sflag [#allocation3], 1
    %2084 = vsyncpa %s2083, 1
    %2085 = vsyncpa [#allocation6], 1
    %2086 = vsyncpa [#allocation4], 1
    %s2087 = scalar_lea.sflag [#allocation4], 1
    %2088 = vsyncpa %s2087, 1

</llo_original>
